<compile_context>
chip_gen: v6e
topology: v6e:2x2x1
jax: 0.10.0
libtpu: 0.0.40
codegen_flags: <defaults>
</compile_context>

<pallas_src>
import math

import jax
import jax.numpy as jnp
from jax.experimental import pallas as pl
from jax.experimental.pallas import tpu as pltpu

# ------------------------- problem sizes -------------------------
B = 2              # batch (example; kernel is batch-generic)
H_IMG = 16         # patch spatial size
C_IMG = 3
C_PAD = 8          # channel dim zero-padded to 8 for the stand-in projection matmul
HW = H_IMG * H_IMG # 256
EVENT_DIM = 16     # 130 - 54 - 60
HOG_DIM = 324      # 162 * 2
NUM_FTRS = 2048    # ResNet50 fc.in_features
NODE_DIM = 54
NODE_PAD = 64      # nodes zero-padded to 64 cols (aligned head-weight block)
HOG_RED1 = 100
HOG_RED2 = 60
HOG_PAD = 64       # hog zero-padded to 64 cols (aligned head-weight block)
FEAT = 130         # event + nodes + hog
NBRANCH = 5        # m1, m2, m12, m21, mc
HEAD_HID = 20
HEAD_HID_ALL = NBRANCH * HEAD_HID   # 100
OUT_DIM = 4
OUT_ALL = NBRANCH * OUT_DIM         # 20
EPS = 1e-5

# ---- big bf16 slab (width 2048): backbone proj + transposed resnet fc ----
PROJ_R0, PROJ_R1 = 0, C_PAD                   # rows 0:8   (3 real + zero rows)
RESFC_R0, RESFC_R1 = 16, 16 + NODE_PAD        # rows 16:80 (54 real + zero rows)
BIG_ROWS = RESFC_R1                           # 80

# ---- small bf16 weight slab (width 128), block starts all multiples of 16 ----
WSLAB_W = 128
RD1_R0 = 0       # rd1_w   (324, 100)
RD2_R0 = 336     # rd2_w   (100,  60->64)
HE_R0 = 448      # head1 event block  (16, 100)
HN_R0 = 464      # head1 nodes block  (54->64, 100)
HH_R0 = 528      # head1 hog block    (60->64, 100)
H2_R0 = 592      # head2 block-diagonal (100, 20)
WSLAB_ROWS = 704

# ---- f32 vector slab (width 128): one row per bias / BN param ----
(V_RESFC_B, V_RD1_B, V_BN1_G, V_BN1_B,
 V_RD2_B, V_BN2_G, V_BN2_B, V_H1_B, V_H2_B) = range(9)
VEC_ROWS = 9


# ------------------------- the kernel -------------------------
def _bn_train(x, gamma, beta):
    """Training-mode BatchNorm1d: biased batch statistics over axis 0 (f32)."""
    mu = jnp.mean(x, axis=0, keepdims=True)
    var = jnp.mean((x - mu) ** 2, axis=0, keepdims=True)
    return (x - mu) * jax.lax.rsqrt(var + EPS) * gamma + beta


def mind_kernel(patch_ref, event_ref, hog_ref, big_ref, wslab_ref, vec_ref, out_ref):
    f32, bf16 = jnp.float32, jnp.bfloat16
    b = patch_ref.shape[0]

    # ---- in-kernel global-average-pool + channel zero-pad (backbone stand-in) ----
    gap3 = jnp.mean(patch_ref[...], axis=-1)                                   # (B, 3)
    gap = jnp.concatenate([gap3, jnp.zeros((b, C_PAD - C_IMG), f32)], axis=1)  # (B, 8)

    # ---- backbone stand-in projection + replaced resnet fc (bf16 w, f32 acc) ----
    feat = jnp.dot(gap.astype(bf16), big_ref[PROJ_R0:PROJ_R1, :],
                   preferred_element_type=f32)
    feat = jnp.maximum(feat, 0.0)                                              # (B, 2048)
    # resnet fc stored transposed (64, 2048): contract last dims (A @ W^T),
    # lane-dense along K -> half the DMA bytes vs a (2048, 54->128) layout.
    nodes = jax.lax.dot_general(
        feat.astype(bf16), big_ref[RESFC_R0:RESFC_R1, :],
        (((1,), (1,)), ((), ())), preferred_element_type=f32)
    nodes = nodes + vec_ref[V_RESFC_B:V_RESFC_B + 1, 0:NODE_PAD]               # (B, 64), cols 54:64 == 0

    # ---- HOG reduce-dim MLP with training-mode BatchNorm1d (batch stats, f32) ----
    h = jnp.dot(hog_ref[...].astype(bf16),
                wslab_ref[RD1_R0:RD1_R0 + HOG_DIM, 0:HOG_RED1],
                preferred_element_type=f32)
    h = h + vec_ref[V_RD1_B:V_RD1_B + 1, 0:HOG_RED1]
    h = jnp.maximum(h, 0.0)
    h = _bn_train(h,
                  vec_ref[V_BN1_G:V_BN1_G + 1, 0:HOG_RED1],
                  vec_ref[V_BN1_B:V_BN1_B + 1, 0:HOG_RED1])                    # (B, 100)

    h = jnp.dot(h.astype(bf16),
                wslab_ref[RD2_R0:RD2_R0 + HOG_RED1, 0:HOG_PAD],
                preferred_element_type=f32)
    h = h + vec_ref[V_RD2_B:V_RD2_B + 1, 0:HOG_PAD]
    h = jnp.maximum(h, 0.0)
    hogf = _bn_train(h,
                     vec_ref[V_BN2_G:V_BN2_G + 1, 0:HOG_PAD],
                     vec_ref[V_BN2_B:V_BN2_B + 1, 0:HOG_PAD])                  # (B, 64), cols 60:64 == 0

    # ---- 5 classifier heads: lane concat eliminated, z = e@We + n@Wn + h@Wh + b ----
    z = (jnp.dot(event_ref[...].astype(bf16),
                 wslab_ref[HE_R0:HE_R0 + EVENT_DIM, 0:HEAD_HID_ALL],
                 preferred_element_type=f32)
         + jnp.dot(nodes.astype(bf16),
                   wslab_ref[HN_R0:HN_R0 + NODE_PAD, 0:HEAD_HID_ALL],
                   preferred_element_type=f32)
         + jnp.dot(hogf.astype(bf16),
                   wslab_ref[HH_R0:HH_R0 + HOG_PAD, 0:HEAD_HID_ALL],
                   preferred_element_type=f32)
         + vec_ref[V_H1_B:V_H1_B + 1, 0:HEAD_HID_ALL])
    z = jnp.maximum(z, 0.0)                                                    # (B, 100)
    # second head layer is block-diagonal (exactly the 5 independent branches)
    out_ref[...] = (jnp.dot(z.astype(bf16),
                            wslab_ref[H2_R0:H2_R0 + HEAD_HID_ALL, 0:OUT_ALL],
                            preferred_element_type=f32)
                    + vec_ref[V_H2_B:V_H2_B + 1, 0:OUT_ALL])                   # (B, 20)


# ------------------------- parameter init & packing -------------------------
def _linear(key, fan_in, fan_out):
    """PyTorch nn.Linear default init, weight stored as (in, out)."""
    kw, kb = jax.random.split(key)
    bound = 1.0 / math.sqrt(float(fan_in))
    w = jax.random.uniform(kw, (fan_in, fan_out), jnp.float32, -bound, bound)
    b = jax.random.uniform(kb, (1, fan_out), jnp.float32, -bound, bound)
    return w, b


def init_params(key):
    keys = jax.random.split(key, 6)

    # ---- raw f32 params (also used by the pure-f32 reference check) ----
    rd1_w, rd1_b = _linear(keys[0], HOG_DIM, HOG_RED1)
    rd2_w, rd2_b = _linear(keys[1], HOG_RED1, HOG_RED2)
    bn1_g = jnp.ones((1, HOG_RED1), jnp.float32)
    bn1_b = jnp.zeros((1, HOG_RED1), jnp.float32)
    bn2_g = jnp.ones((1, HOG_RED2), jnp.float32)
    bn2_b = jnp.zeros((1, HOG_RED2), jnp.float32)
    resfc_w, resfc_b = _linear(keys[2], NUM_FTRS, NODE_DIM)        # (2048, 54)
    proj = 0.05 * jax.random.normal(keys[3], (C_IMG, NUM_FTRS), jnp.float32)

    kh1 = jax.random.split(keys[4], NBRANCH)
    kh2 = jax.random.split(keys[5], NBRANCH)
    h1 = [_linear(kh1[m], FEAT, HEAD_HID) for m in range(NBRANCH)]
    h2 = [_linear(kh2[m], HEAD_HID, OUT_DIM) for m in range(NBRANCH)]
    h1_w = jnp.concatenate([w for w, _ in h1], axis=1)             # (130, 100)
    h1_b = jnp.concatenate([b for _, b in h1], axis=1)             # (1, 100)
    h2_blk = jnp.zeros((HEAD_HID_ALL, OUT_ALL), jnp.float32)
    for m in range(NBRANCH):                                       # block-diagonal (exact)
        h2_blk = h2_blk.at[m * HEAD_HID:(m + 1) * HEAD_HID,
                           m * OUT_DIM:(m + 1) * OUT_DIM].set(h2[m][0])
    h2_b = jnp.concatenate([b for _, b in h2], axis=1)             # (1, 20)

    raw = dict(proj=proj, resfc_w=resfc_w, resfc_b=resfc_b,
               rd1_w=rd1_w, rd1_b=rd1_b, bn1_g=bn1_g, bn1_b=bn1_b,
               rd2_w=rd2_w, rd2_b=rd2_b, bn2_g=bn2_g, bn2_b=bn2_b,
               h1_w=h1_w, h1_b=h1_b, h2_w=h2_blk, h2_b=h2_b)

    # ---- big bf16 slab: backbone proj (rows 0:8) + resnet fc^T (rows 16:80) ----
    big = jnp.zeros((BIG_ROWS, NUM_FTRS), jnp.float32)
    big = big.at[PROJ_R0:PROJ_R0 + C_IMG, :].set(proj)
    big = big.at[RESFC_R0:RESFC_R0 + NODE_DIM, :].set(resfc_w.T)
    big = big.astype(jnp.bfloat16)

    # ---- small bf16 weight slab: rd1, rd2, head1 row-blocks, block-diag head2 ----
    w = jnp.zeros((WSLAB_ROWS, WSLAB_W), jnp.float32)
    w = w.at[RD1_R0:RD1_R0 + HOG_DIM, 0:HOG_RED1].set(rd1_w)
    w = w.at[RD2_R0:RD2_R0 + HOG_RED1, 0:HOG_RED2].set(rd2_w)
    w = w.at[HE_R0:HE_R0 + EVENT_DIM, 0:HEAD_HID_ALL].set(h1_w[0:EVENT_DIM])
    w = w.at[HN_R0:HN_R0 + NODE_DIM, 0:HEAD_HID_ALL].set(
        h1_w[EVENT_DIM:EVENT_DIM + NODE_DIM])
    w = w.at[HH_R0:HH_R0 + HOG_RED2, 0:HEAD_HID_ALL].set(
        h1_w[EVENT_DIM + NODE_DIM:FEAT])
    w = w.at[H2_R0:H2_R0 + HEAD_HID_ALL, 0:OUT_ALL].set(h2_blk)
    wslab = w.astype(jnp.bfloat16)

    # ---- f32 vector slab: all biases / BN affine params (one row each) ----
    v = jnp.zeros((VEC_ROWS, WSLAB_W), jnp.float32)
    v = v.at[V_RESFC_B, 0:NODE_DIM].set(resfc_b[0])        # cols 54:64 stay 0
    v = v.at[V_RD1_B, 0:HOG_RED1].set(rd1_b[0])
    v = v.at[V_BN1_G, 0:HOG_RED1].set(bn1_g[0])
    v = v.at[V_BN1_B, 0:HOG_RED1].set(bn1_b[0])
    v = v.at[V_RD2_B, 0:HOG_RED2].set(rd2_b[0])            # cols 60:64 stay 0
    v = v.at[V_BN2_G, 0:HOG_RED2].set(bn2_g[0])
    v = v.at[V_BN2_G, HOG_RED2:HOG_PAD].set(1.0)           # pad gamma=1 (inert: inputs 0)
    v = v.at[V_BN2_B, 0:HOG_RED2].set(bn2_b[0])            # pad beta=0 -> padded cols stay 0
    v = v.at[V_H1_B, 0:HEAD_HID_ALL].set(h1_b[0])
    v = v.at[V_H2_B, 0:OUT_ALL].set(h2_b[0])

    packed = dict(big=big, wslab=wslab, vec=v)
    return packed, raw


# ------------------------- wrapper -------------------------
def _cost_estimate(b):
    flops = 2 * b * (C_PAD * NUM_FTRS + NUM_FTRS * NODE_PAD + HOG_DIM * HOG_RED1
                     + HOG_RED1 * HOG_PAD
                     + (EVENT_DIM + NODE_PAD + HOG_PAD) * HEAD_HID_ALL
                     + HEAD_HID_ALL * OUT_ALL)
    bytes_accessed = (b * C_IMG * HW * 4 + b * EVENT_DIM * 4 + b * HOG_DIM * 4
                      + BIG_ROWS * NUM_FTRS * 2 + WSLAB_ROWS * WSLAB_W * 2
                      + VEC_ROWS * WSLAB_W * 4 + b * OUT_ALL * 4)
    return pl.CostEstimate(flops=flops, transcendentals=HOG_RED1 + HOG_PAD,
                           bytes_accessed=bytes_accessed)


@jax.jit
def mind_hog_forward(event, obj_patch, hog_feature, packed):
    """Returns one (B, 5, 4) array; branch m of the PyTorch 5-tuple is out[:, m, :].

    NOTE: at B=2 this kernel is launch/DMA-latency bound (~1.5% MXU occupancy) —
    callers with many samples should stack them into ONE call (the kernel is
    batch-generic). No batch grid is used because training-mode BatchNorm1d couples
    all rows of the batch and the working set (<1 MiB) needs no tiling.
    """
    b = event.shape[0]
    # free reshape only; GAP + channel zero-pad happen inside the kernel
    patch = obj_patch.astype(jnp.float32).reshape(b, C_IMG, HW)
    out = pl.pallas_call(
        mind_kernel,
        out_shape=jax.ShapeDtypeStruct((b, OUT_ALL), jnp.float32),
        in_specs=[pl.BlockSpec(memory_space=pltpu.MemorySpace.VMEM)] * 6,
        out_specs=pl.BlockSpec(memory_space=pltpu.MemorySpace.VMEM),
        cost_estimate=_cost_estimate(b),
    )(patch, event.astype(jnp.float32), hog_feature.astype(jnp.float32),
      packed["big"], packed["wslab"], packed["vec"])
    return out.reshape(b, NBRANCH, OUT_DIM)


# ------------------------- pure-f32 reference (for tolerance check) -------------------------
def _bn_ref(x, g, b):
    mu = jnp.mean(x, axis=0, keepdims=True)
    var = jnp.mean((x - mu) ** 2, axis=0, keepdims=True)
    return (x - mu) * jax.lax.rsqrt(var + EPS) * g + b


def reference_forward(event, obj_patch, hog_feature, raw):
    gap = jnp.mean(obj_patch, axis=(-2, -1))                       # (B, 3)
    feat = jnp.maximum(gap @ raw["proj"], 0.0)                     # (B, 2048)
    nodes = feat @ raw["resfc_w"] + raw["resfc_b"]                 # (B, 54)
    h = jnp.maximum(hog_feature @ raw["rd1_w"] + raw["rd1_b"], 0.0)
    h = _bn_ref(h, raw["bn1_g"], raw["bn1_b"])
    h = jnp.maximum(h @ raw["rd2_w"] + raw["rd2_b"], 0.0)
    hogf = _bn_ref(h, raw["bn2_g"], raw["bn2_b"])                  # (B, 60)
    fc_in = jnp.concatenate([event, nodes, hogf], axis=1)          # (B, 130)
    z = jnp.maximum(fc_in @ raw["h1_w"] + raw["h1_b"], 0.0)
    out = z @ raw["h2_w"] + raw["h2_b"]                            # (B, 20)
    return out.reshape(event.shape[0], NBRANCH, OUT_DIM)


# ------------------------- main -------------------------
if __name__ == "__main__":
    key = jax.random.PRNGKey(0)
    k_e, k_p, k_h, k_w = jax.random.split(key, 4)

    event = jax.random.normal(k_e, (B, EVENT_DIM), jnp.float32)
    obj_patch = jax.random.normal(k_p, (B, C_IMG, H_IMG, H_IMG), jnp.float32)
    hog_feature = jax.random.normal(k_h, (B, HOG_DIM), jnp.float32)

    packed, raw = init_params(k_w)

    out = mind_hog_forward(event, obj_patch, hog_feature, packed)
    out = jax.block_until_ready(out)

    assert out.shape == (B, NBRANCH, OUT_DIM)
    assert bool(jnp.all(jnp.isfinite(out)))

    # branch outputs matching the PyTorch 5-tuple order (m1, m2, m12, m21, mc)
    branches = tuple(out[:, m, :] for m in range(NBRANCH))
    assert len(branches) == NBRANCH
    for o in branches:
        assert o.shape == (B, OUT_DIM)

    # tolerance check against a pure-f32 JAX reference (bf16 MXU inputs -> ~1e-2 rel err)
    ref = reference_forward(event, obj_patch, hog_feature, raw)
    assert bool(jnp.allclose(out, ref, rtol=1e-1, atol=1e-1)), \
        f"max abs diff {float(jnp.max(jnp.abs(out - ref)))}"

    print("KERNEL_OK")
</pallas_src>

<mosaic_0001>
module attributes {stable_mosaic.version = 11 : i64} {
  func.func @mind_kernel(%arg0: memref<2x3x256xf32, #tpu.memory_space<vmem>>, %arg1: memref<2x16xf32, #tpu.memory_space<vmem>>, %arg2: memref<2x324xf32, #tpu.memory_space<vmem>>, %arg3: memref<80x2048xbf16, #tpu.memory_space<vmem>>, %arg4: memref<704x128xbf16, #tpu.memory_space<vmem>>, %arg5: memref<9x128xf32, #tpu.memory_space<vmem>>, %arg6: memref<2x20xf32, #tpu.memory_space<vmem>>) attributes {dimension_semantics = [], scalar_prefetch = 0 : i64, scratch_operands = 0 : i64, tpu.core_type = #tpu.core_type<tc>} {
    %c0 = arith.constant 0 : index
    %c0_0 = arith.constant 0 : index
    %c0_1 = arith.constant 0 : index
    %0 = vector.load %arg0[%c0, %c0_0, %c0_1] : memref<2x3x256xf32, #tpu.memory_space<vmem>>, vector<2x3x256xf32>
    %cst = arith.constant dense<0.000000e+00> : vector<2x3xf32>
    %1 = vector.multi_reduction <add>, %0, %cst [2] : vector<2x3x256xf32> to vector<2x3xf32>
    %cst_2 = arith.constant 2.560000e+02 : f32
    %2 = vector.broadcast %cst_2 : f32 to vector<2x3xf32>
    %3 = arith.divf %1, %2 : vector<2x3xf32>
    %cst_3 = arith.constant 0.000000e+00 : f32
    %4 = vector.broadcast %cst_3 : f32 to vector<2x5xf32>
    %5 = tpu.concatenate %3, %4 in 1 : vector<2x3xf32>, vector<2x5xf32> -> vector<2x8xf32>
    %6 = arith.truncf %5 : vector<2x8xf32> to vector<2x8xbf16>
    %c0_4 = arith.constant 0 : index
    %c0_5 = arith.constant 0 : index
    %7 = vector.load %arg3[%c0_4, %c0_5] : memref<80x2048xbf16, #tpu.memory_space<vmem>>, vector<8x2048xbf16>
    %cst_6 = arith.constant dense<0.000000e+00> : vector<2x2048xf32>
    %8 = tpu.matmul %6, %7, %cst_6 {dimension_numbers = #tpu.dot_dimension_numbers<[1], [0], [0], [1], [0, 0, 1, 1], [], []>} : vector<2x8xbf16>, vector<8x2048xbf16>, vector<2x2048xf32> -> vector<2x2048xf32>
    %cst_7 = arith.constant 0.000000e+00 : f32
    %9 = vector.broadcast %cst_7 : f32 to vector<2x2048xf32>
    %10 = arith.maximumf %8, %9 : vector<2x2048xf32>
    %11 = arith.truncf %10 : vector<2x2048xf32> to vector<2x2048xbf16>
    %c16 = arith.constant 16 : index
    %c0_8 = arith.constant 0 : index
    %12 = vector.load %arg3[%c16, %c0_8] : memref<80x2048xbf16, #tpu.memory_space<vmem>>, vector<64x2048xbf16>
    %cst_9 = arith.constant dense<0.000000e+00> : vector<2x64xf32>
    %13 = tpu.matmul %11, %12, %cst_9 {dimension_numbers = #tpu.dot_dimension_numbers<[1], [1], [0], [0], [0, 0, 1, 0], [], []>} : vector<2x2048xbf16>, vector<64x2048xbf16>, vector<2x64xf32> -> vector<2x64xf32>
    %c0_10 = arith.constant 0 : index
    %c0_11 = arith.constant 0 : index
    %14 = vector.load %arg5[%c0_10, %c0_11] : memref<9x128xf32, #tpu.memory_space<vmem>>, vector<1x64xf32>
    %15 = vector.broadcast %14 : vector<1x64xf32> to vector<2x64xf32>
    %16 = arith.addf %13, %15 : vector<2x64xf32>
    %c0_12 = arith.constant 0 : index
    %c0_13 = arith.constant 0 : index
    %17 = vector.load %arg2[%c0_12, %c0_13] : memref<2x324xf32, #tpu.memory_space<vmem>>, vector<2x324xf32>
    %18 = arith.truncf %17 : vector<2x324xf32> to vector<2x324xbf16>
    %c0_14 = arith.constant 0 : index
    %c0_15 = arith.constant 0 : index
    %19 = vector.load %arg4[%c0_14, %c0_15] : memref<704x128xbf16, #tpu.memory_space<vmem>>, vector<324x100xbf16>
    %cst_16 = arith.constant dense<0.000000e+00> : vector<2x100xf32>
    %20 = tpu.matmul %18, %19, %cst_16 {dimension_numbers = #tpu.dot_dimension_numbers<[1], [0], [0], [1], [0, 0, 1, 1], [], []>} : vector<2x324xbf16>, vector<324x100xbf16>, vector<2x100xf32> -> vector<2x100xf32>
    %c1 = arith.constant 1 : index
    %c0_17 = arith.constant 0 : index
    %21 = vector.load %arg5[%c1, %c0_17] : memref<9x128xf32, #tpu.memory_space<vmem>>, vector<1x100xf32>
    %22 = vector.broadcast %21 : vector<1x100xf32> to vector<2x100xf32>
    %23 = arith.addf %20, %22 : vector<2x100xf32>
    %cst_18 = arith.constant 0.000000e+00 : f32
    %24 = vector.broadcast %cst_18 : f32 to vector<2x100xf32>
    %25 = arith.maximumf %23, %24 : vector<2x100xf32>
    %c2 = arith.constant 2 : index
    %c0_19 = arith.constant 0 : index
    %26 = vector.load %arg5[%c2, %c0_19] : memref<9x128xf32, #tpu.memory_space<vmem>>, vector<1x100xf32>
    %c3 = arith.constant 3 : index
    %c0_20 = arith.constant 0 : index
    %27 = vector.load %arg5[%c3, %c0_20] : memref<9x128xf32, #tpu.memory_space<vmem>>, vector<1x100xf32>
    %cst_21 = arith.constant dense<0.000000e+00> : vector<100xf32>
    %28 = vector.multi_reduction <add>, %25, %cst_21 [0] : vector<2x100xf32> to vector<100xf32>
    %29 = vector.shape_cast %28 : vector<100xf32> to vector<1x100xf32>
    %cst_22 = arith.constant 2.000000e+00 : f32
    %30 = vector.broadcast %cst_22 : f32 to vector<1x100xf32>
    %31 = arith.divf %29, %30 : vector<1x100xf32>
    %32 = vector.broadcast %31 : vector<1x100xf32> to vector<2x100xf32>
    %33 = arith.subf %25, %32 : vector<2x100xf32>
    %34 = arith.mulf %33, %33 : vector<2x100xf32>
    %cst_23 = arith.constant dense<0.000000e+00> : vector<100xf32>
    %35 = vector.multi_reduction <add>, %34, %cst_23 [0] : vector<2x100xf32> to vector<100xf32>
    %36 = vector.shape_cast %35 : vector<100xf32> to vector<1x100xf32>
    %cst_24 = arith.constant 2.000000e+00 : f32
    %37 = vector.broadcast %cst_24 : f32 to vector<1x100xf32>
    %38 = arith.divf %36, %37 : vector<1x100xf32>
    %39 = vector.broadcast %31 : vector<1x100xf32> to vector<2x100xf32>
    %40 = arith.subf %25, %39 : vector<2x100xf32>
    %cst_25 = arith.constant 9.99999974E-6 : f32
    %41 = vector.broadcast %cst_25 : f32 to vector<1x100xf32>
    %42 = arith.addf %38, %41 : vector<1x100xf32>
    %43 = math.rsqrt %42 : vector<1x100xf32>
    %44 = vector.broadcast %43 : vector<1x100xf32> to vector<2x100xf32>
    %45 = arith.mulf %40, %44 : vector<2x100xf32>
    %46 = vector.broadcast %26 : vector<1x100xf32> to vector<2x100xf32>
    %47 = arith.mulf %45, %46 : vector<2x100xf32>
    %48 = vector.broadcast %27 : vector<1x100xf32> to vector<2x100xf32>
    %49 = arith.addf %47, %48 : vector<2x100xf32>
    %50 = arith.truncf %49 : vector<2x100xf32> to vector<2x100xbf16>
    %c336 = arith.constant 336 : index
    %c0_26 = arith.constant 0 : index
    %51 = vector.load %arg4[%c336, %c0_26] : memref<704x128xbf16, #tpu.memory_space<vmem>>, vector<100x64xbf16>
    %cst_27 = arith.constant dense<0.000000e+00> : vector<2x64xf32>
    %52 = tpu.matmul %50, %51, %cst_27 {dimension_numbers = #tpu.dot_dimension_numbers<[1], [0], [0], [1], [0, 0, 1, 1], [], []>} : vector<2x100xbf16>, vector<100x64xbf16>, vector<2x64xf32> -> vector<2x64xf32>
    %c4 = arith.constant 4 : index
    %c0_28 = arith.constant 0 : index
    %53 = vector.load %arg5[%c4, %c0_28] : memref<9x128xf32, #tpu.memory_space<vmem>>, vector<1x64xf32>
    %54 = vector.broadcast %53 : vector<1x64xf32> to vector<2x64xf32>
    %55 = arith.addf %52, %54 : vector<2x64xf32>
    %cst_29 = arith.constant 0.000000e+00 : f32
    %56 = vector.broadcast %cst_29 : f32 to vector<2x64xf32>
    %57 = arith.maximumf %55, %56 : vector<2x64xf32>
    %c5 = arith.constant 5 : index
    %c0_30 = arith.constant 0 : index
    %58 = vector.load %arg5[%c5, %c0_30] : memref<9x128xf32, #tpu.memory_space<vmem>>, vector<1x64xf32>
    %c6 = arith.constant 6 : index
    %c0_31 = arith.constant 0 : index
    %59 = vector.load %arg5[%c6, %c0_31] : memref<9x128xf32, #tpu.memory_space<vmem>>, vector<1x64xf32>
    %cst_32 = arith.constant dense<0.000000e+00> : vector<64xf32>
    %60 = vector.multi_reduction <add>, %57, %cst_32 [0] : vector<2x64xf32> to vector<64xf32>
    %61 = vector.shape_cast %60 : vector<64xf32> to vector<1x64xf32>
    %cst_33 = arith.constant 2.000000e+00 : f32
    %62 = vector.broadcast %cst_33 : f32 to vector<1x64xf32>
    %63 = arith.divf %61, %62 : vector<1x64xf32>
    %64 = vector.broadcast %63 : vector<1x64xf32> to vector<2x64xf32>
    %65 = arith.subf %57, %64 : vector<2x64xf32>
    %66 = arith.mulf %65, %65 : vector<2x64xf32>
    %cst_34 = arith.constant dense<0.000000e+00> : vector<64xf32>
    %67 = vector.multi_reduction <add>, %66, %cst_34 [0] : vector<2x64xf32> to vector<64xf32>
    %68 = vector.shape_cast %67 : vector<64xf32> to vector<1x64xf32>
    %cst_35 = arith.constant 2.000000e+00 : f32
    %69 = vector.broadcast %cst_35 : f32 to vector<1x64xf32>
    %70 = arith.divf %68, %69 : vector<1x64xf32>
    %71 = vector.broadcast %63 : vector<1x64xf32> to vector<2x64xf32>
    %72 = arith.subf %57, %71 : vector<2x64xf32>
    %cst_36 = arith.constant 9.99999974E-6 : f32
    %73 = vector.broadcast %cst_36 : f32 to vector<1x64xf32>
    %74 = arith.addf %70, %73 : vector<1x64xf32>
    %75 = math.rsqrt %74 : vector<1x64xf32>
    %76 = vector.broadcast %75 : vector<1x64xf32> to vector<2x64xf32>
    %77 = arith.mulf %72, %76 : vector<2x64xf32>
    %78 = vector.broadcast %58 : vector<1x64xf32> to vector<2x64xf32>
    %79 = arith.mulf %77, %78 : vector<2x64xf32>
    %80 = vector.broadcast %59 : vector<1x64xf32> to vector<2x64xf32>
    %81 = arith.addf %79, %80 : vector<2x64xf32>
    %c0_37 = arith.constant 0 : index
    %c0_38 = arith.constant 0 : index
    %82 = vector.load %arg1[%c0_37, %c0_38] : memref<2x16xf32, #tpu.memory_space<vmem>>, vector<2x16xf32>
    %83 = arith.truncf %82 : vector<2x16xf32> to vector<2x16xbf16>
    %c448 = arith.constant 448 : index
    %c0_39 = arith.constant 0 : index
    %84 = vector.load %arg4[%c448, %c0_39] : memref<704x128xbf16, #tpu.memory_space<vmem>>, vector<16x100xbf16>
    %cst_40 = arith.constant dense<0.000000e+00> : vector<2x100xf32>
    %85 = tpu.matmul %83, %84, %cst_40 {dimension_numbers = #tpu.dot_dimension_numbers<[1], [0], [0], [1], [0, 0, 1, 1], [], []>} : vector<2x16xbf16>, vector<16x100xbf16>, vector<2x100xf32> -> vector<2x100xf32>
    %86 = arith.truncf %16 : vector<2x64xf32> to vector<2x64xbf16>
    %c464 = arith.constant 464 : index
    %c0_41 = arith.constant 0 : index
    %87 = vector.load %arg4[%c464, %c0_41] : memref<704x128xbf16, #tpu.memory_space<vmem>>, vector<64x100xbf16>
    %cst_42 = arith.constant dense<0.000000e+00> : vector<2x100xf32>
    %88 = tpu.matmul %86, %87, %cst_42 {dimension_numbers = #tpu.dot_dimension_numbers<[1], [0], [0], [1], [0, 0, 1, 1], [], []>} : vector<2x64xbf16>, vector<64x100xbf16>, vector<2x100xf32> -> vector<2x100xf32>
    %89 = arith.addf %85, %88 : vector<2x100xf32>
    %90 = arith.truncf %81 : vector<2x64xf32> to vector<2x64xbf16>
    %c528 = arith.constant 528 : index
    %c0_43 = arith.constant 0 : index
    %91 = vector.load %arg4[%c528, %c0_43] : memref<704x128xbf16, #tpu.memory_space<vmem>>, vector<64x100xbf16>
    %cst_44 = arith.constant dense<0.000000e+00> : vector<2x100xf32>
    %92 = tpu.matmul %90, %91, %cst_44 {dimension_numbers = #tpu.dot_dimension_numbers<[1], [0], [0], [1], [0, 0, 1, 1], [], []>} : vector<2x64xbf16>, vector<64x100xbf16>, vector<2x100xf32> -> vector<2x100xf32>
    %93 = arith.addf %89, %92 : vector<2x100xf32>
    %c7 = arith.constant 7 : index
    %c0_45 = arith.constant 0 : index
    %94 = vector.load %arg5[%c7, %c0_45] : memref<9x128xf32, #tpu.memory_space<vmem>>, vector<1x100xf32>
    %95 = vector.broadcast %94 : vector<1x100xf32> to vector<2x100xf32>
    %96 = arith.addf %93, %95 : vector<2x100xf32>
    %cst_46 = arith.constant 0.000000e+00 : f32
    %97 = vector.broadcast %cst_46 : f32 to vector<2x100xf32>
    %98 = arith.maximumf %96, %97 : vector<2x100xf32>
    %99 = arith.truncf %98 : vector<2x100xf32> to vector<2x100xbf16>
    %c592 = arith.constant 592 : index
    %c0_47 = arith.constant 0 : index
    %100 = vector.load %arg4[%c592, %c0_47] : memref<704x128xbf16, #tpu.memory_space<vmem>>, vector<100x20xbf16>
    %cst_48 = arith.constant dense<0.000000e+00> : vector<2x20xf32>
    %101 = tpu.matmul %99, %100, %cst_48 {dimension_numbers = #tpu.dot_dimension_numbers<[1], [0], [0], [1], [0, 0, 1, 1], [], []>} : vector<2x100xbf16>, vector<100x20xbf16>, vector<2x20xf32> -> vector<2x20xf32>
    %c8 = arith.constant 8 : index
    %c0_49 = arith.constant 0 : index
    %102 = vector.load %arg5[%c8, %c0_49] : memref<9x128xf32, #tpu.memory_space<vmem>>, vector<1x20xf32>
    %103 = vector.broadcast %102 : vector<1x20xf32> to vector<2x20xf32>
    %104 = arith.addf %101, %103 : vector<2x20xf32>
    %c0_50 = arith.constant 0 : index
    %c0_51 = arith.constant 0 : index
    %105 = vector.load %arg6[%c0_50, %c0_51] : memref<2x20xf32, #tpu.memory_space<vmem>>, vector<2x20xf32>
    tpu.vector_store %arg6[%c0_50, %c0_51], %104 {strides = array<i32>} : memref<2x20xf32, #tpu.memory_space<vmem>>, vector<2x20xf32>,
    return
  }
}

</mosaic_0001>

<llo_original>
// kernel: mind_hog_forward.1
$region0: #{mind_hog_forward.1}
  #allocation0 [shape = 'u32[]', space=smem, size = 0x4, offset = 0x4, fixed_abs, tag = 'smem constant byte address 0x4 - core index']
  #allocation1 [shape = 'u32[144,128]{1,0:T(1,128)}', space=vmem, size = 0x12000, scoped, tag = 'internal scratch']
  %s0 = inlined_call_operand.vmem [shape: f32[2,3,256], index: 0, kind: input, shape index: {}]
  %s1 = inlined_call_operand.vmem [shape: f32[2,16], index: 1, kind: input, shape index: {}]
  %s2 = inlined_call_operand.vmem [shape: f32[2,324], index: 2, kind: input, shape index: {}]
  %s3 = inlined_call_operand.hbm [shape: bf16[80,2048], index: 3, kind: input, shape index: {}]
  %s4 = inlined_call_operand.hbm [shape: bf16[704,128], index: 4, kind: input, shape index: {}]
  %s5 = inlined_call_operand.vmem [shape: f32[9,128], index: 5, kind: input, shape index: {}]
  %s6 = inlined_call_operand.vmem [shape: f32[2,20], index: 6, kind: output, shape index: {}]
  %s7 = sld [smem:[#allocation0]]
  $region42: #{mind_hog_forward.1} parent=0
    _
  %s9 = ssub.s32 1, %s7
  %s10 = scalar_select 0, %s9, %s7
  $region1: #{mind_hog_forward.1} parent=0
    #allocation2 [shape = 'u8[327680]{0}', space=vmem, size = 0x50000, scoped, tag = 'input window, operand 3, single buffered']
    #allocation3 [shape = 's32[1]{0}', space=sflag, size = 0x4, scoped, tag = 'scoped memory for mind_hog_forward.1']
    #allocation4 [shape = 'u8[180224]{0}', space=vmem, size = 0x2c000, scoped, tag = 'input window, operand 4, single buffered']
    #allocation5 [shape = 's32[1]{0}', space=sflag, size = 0x4, scoped, tag = 'scoped memory for mind_hog_forward.1']
    %11 = vsyncpa [#allocation3], 0
    %12 = vsyncpa [#allocation5], 0
    // Predicated region
    $region2: #{mind_hog_forward.1} parent=1 // pred_check
      _
    $region3: #{mind_hog_forward.1} parent=1 // pred_check_branch
      %14 = sbr.rel (0) target = $region5
    $region4: #{mind_hog_forward.1} parent=1 // pred_region
      _
    $region5: #{mind_hog_forward.1} parent=1 // pred_fallthru
      _
    // Predicated region
    $region6: #{mind_hog_forward.1} parent=1 // pred_check
      _
    $region7: #{mind_hog_forward.1} parent=1 // pred_check_branch
      %16 = sbr.rel (0) target = $region9
    $region8: #{mind_hog_forward.1} parent=1 // pred_region
      _
    $region9: #{mind_hog_forward.1} parent=1 // pred_fallthru
      _
    // Predicated region
    $region10: #{mind_hog_forward.1} parent=1 // pred_check
      _
    $region11: #{mind_hog_forward.1} parent=1 // pred_check_branch
      %18 = sbr.rel (0) target = $region13
    $region12: #{mind_hog_forward.1} parent=1 // pred_region
      _
    $region13: #{mind_hog_forward.1} parent=1 // pred_fallthru
      _
    // Predicated region
    $region14: #{mind_hog_forward.1} parent=1 // pred_check
      _
    $region15: #{mind_hog_forward.1} parent=1 // pred_check_branch
      %20 = sbr.rel (0) target = $region17
    $region16: #{mind_hog_forward.1} parent=1 // pred_region
      %s22 = ssub.s32 10240, 10240
      %23 = vsyncadd [#allocation3], %s22
      %s24 = sshll.u32 [#allocation2], 4
      %s25 = int_to_ptr.vmem [resolvable:$true] %s24
      %30 = dma.hbm_to_vmem [thread:$0]  %s3, 10240, %s25, [#allocation3], 1024, 1024, 64
    $region17: #{mind_hog_forward.1} parent=1 // pred_fallthru
      _
    // Predicated region
    $region18: #{mind_hog_forward.1} parent=1 // pred_check
      _
    $region19: #{mind_hog_forward.1} parent=1 // pred_check_branch
      %32 = sbr.rel (0) target = $region21
    $region20: #{mind_hog_forward.1} parent=1 // pred_region
      %s34 = ssub.s32 5632, 5632
      %35 = vsyncadd [#allocation5], %s34
      %s36 = sshll.u32 [#allocation4], 4
      %s37 = int_to_ptr.vmem [resolvable:$true] %s36
      %42 = dma.hbm_to_vmem [thread:$0]  %s4, 5632, %s37, [#allocation5], 64, 64, 4
    $region21: #{mind_hog_forward.1} parent=1 // pred_fallthru
      _
    // Predicated region
    $region22: #{mind_hog_forward.1} parent=1 // pred_check
      _
    $region23: #{mind_hog_forward.1} parent=1 // pred_check_branch
      %44 = sbr.rel (0) target = $region25
    $region24: #{mind_hog_forward.1} parent=1 // pred_region
      _
    $region25: #{mind_hog_forward.1} parent=1 // pred_fallthru
      _
    // Predicated region
    $region26: #{mind_hog_forward.1} parent=1 // pred_check
      _
    $region27: #{mind_hog_forward.1} parent=1 // pred_check_branch
      %46 = sbr.rel (0) target = $region29
    $region28: #{mind_hog_forward.1} parent=1 // pred_region
      %47 = dma.done [#allocation3], 10240
    $region29: #{mind_hog_forward.1} parent=1 // pred_fallthru
      _
    // Predicated region
    $region30: #{mind_hog_forward.1} parent=1 // pred_check
      _
    $region31: #{mind_hog_forward.1} parent=1 // pred_check_branch
      %49 = sbr.rel (0) target = $region33
    $region32: #{mind_hog_forward.1} parent=1 // pred_region
      %50 = dma.done [#allocation5], 5632
    $region33: #{mind_hog_forward.1} parent=1 // pred_fallthru
      _
    %v52 = vld [vmem:[%s0] sm:$0x77]
    %v53 = vld [vmem:[%s0 + $0x8] sm:$0x77]
    %v56 = vcombine.high %v52, %v52
    %v57 = vcombine.high %v53, %v53
    %vm60 = vcmask 1042432
    %v61 = vsel %vm60, %v52, 0.0
    %v62 = vsel %vm60, %v56, 0.0
    %v63 = vadd.f32 %v61, %v62
    %64 = vadd.xlane.f32.xlu0 %v63
    %v65 = vpop.xlane.xlu0 %64
    %v66 = vsel %vm60, %v53, 0.0
    %v67 = vsel %vm60, %v57, 0.0
    %v68 = vadd.f32 %v66, %v67
    %69 = vadd.xlane.f32.xlu0 %v68
    %v70 = vpop.xlane.xlu0 %69
    %v71 = vrcp.pop 256.0
    %v72 = vmul.f32 %v65, %v71
    %v73 = vmul.f32 %v70, %v71
    %v76 = vlaneseq
    %v77 = vand.u32 %v76, 127
    %v78 = vlaneseq
    %v79 = vshrl.u32 %v78, 7
    %v80 = vsub.s32 %v77, %v79
    %v81 = vrot.slane %v72, %v80
    %v82 = vlaneseq
    %v83 = vshrl.u32 %v82, 7
    %v84 = vsub.s32 %v77, %v83
    %v85 = vrot.slane %v73, %v84
    %vm86 = vcmask 1041409
    %v87 = vsel %vm86, %v85, %v81
    %vm89 = vcmask 23552
    %v90 = vsel %vm89, %v87, 0.0
    %v91 = vpack.c.bf16 %v90, %v90
    %v92 = vld [vmem:[#allocation2] sm:$0xff]
    %v93 = vld [vmem:[#allocation2 + $0x8] sm:$0xff]
    %v94 = vld [vmem:[#allocation2 + $0x10] sm:$0xff]
    %v95 = vld [vmem:[#allocation2 + $0x18] sm:$0xff]
    %v96 = vld [vmem:[#allocation2 + $0x20] sm:$0xff]
    %v97 = vld [vmem:[#allocation2 + $0x28] sm:$0xff]
    %v98 = vld [vmem:[#allocation2 + $0x30] sm:$0xff]
    %v99 = vld [vmem:[#allocation2 + $0x38] sm:$0xff]
    %v108 = vunpack.c.l.b16 %v92
    %v109 = vunpack.c.h.b16 %v92
    %v110 = vunpack.c.l.b16 %v93
    %v111 = vunpack.c.h.b16 %v93
    %v112 = vunpack.c.l.b16 %v94
    %v113 = vunpack.c.h.b16 %v94
    %v114 = vunpack.c.l.b16 %v95
    %v115 = vunpack.c.h.b16 %v95
    %v116 = vunpack.c.l.b16 %v96
    %v117 = vunpack.c.h.b16 %v96
    %v118 = vunpack.c.l.b16 %v97
    %v119 = vunpack.c.h.b16 %v97
    %v120 = vunpack.c.l.b16 %v98
    %v121 = vunpack.c.h.b16 %v98
    %v122 = vunpack.c.l.b16 %v99
    %v123 = vunpack.c.h.b16 %v99
    %v124 = vpack.c.b16 %v108, %v108
    %v125 = vpack.c.b16 %v109, %v109
    %v126 = vpack.c.b16 %v110, %v110
    %v127 = vpack.c.b16 %v111, %v111
    %v128 = vpack.c.b16 %v112, %v112
    %v129 = vpack.c.b16 %v113, %v113
    %v130 = vpack.c.b16 %v114, %v114
    %v131 = vpack.c.b16 %v115, %v115
    %v132 = vpack.c.b16 %v116, %v116
    %v133 = vpack.c.b16 %v117, %v117
    %v134 = vpack.c.b16 %v118, %v118
    %v135 = vpack.c.b16 %v119, %v119
    %v136 = vpack.c.b16 %v120, %v120
    %v137 = vpack.c.b16 %v121, %v121
    %v138 = vpack.c.b16 %v122, %v122
    %v139 = vpack.c.b16 %v123, %v123
    %vm140 = vcmask 64512
    %v142 = vsel %vm140, %v91, 0
    %vm144 = vcmask 1043456
    %v146 = vsel %vm144, %v124, 0
    %v149 = vsel %vm144, %v125, 0
    %v152 = vsel %vm144, %v126, 0
    %v155 = vsel %vm144, %v127, 0
    %v158 = vsel %vm144, %v128, 0
    %v161 = vsel %vm144, %v129, 0
    %v164 = vsel %vm144, %v130, 0
    %v167 = vsel %vm144, %v131, 0
    %v170 = vsel %vm144, %v132, 0
    %v173 = vsel %vm144, %v133, 0
    %v176 = vsel %vm144, %v134, 0
    %v179 = vsel %vm144, %v135, 0
    %v182 = vsel %vm144, %v136, 0
    %v185 = vsel %vm144, %v137, 0
    %v188 = vsel %vm144, %v138, 0
    %v191 = vsel %vm144, %v139, 0
    %193 = vmatprep.subr.bf16.mxu0 0
    %194 = vmatpush1.bf16.msra.mxu0 0
    %195 = vmatprep.subr.bf16.mxu0 0
    %196 = vmatpush1.bf16.msra.mxu0 0
    %197 = vmatprep.subr.bf16.mxu0 0
    %198 = vmatpush1.bf16.msra.mxu0 0
    %199 = vmatprep.subr.bf16.mxu0 0
    %200 = vmatpush1.bf16.msra.mxu0 0
    %201 = vmatprep.subr.bf16.mxu0 0
    %202 = vmatpush1.bf16.msra.mxu0 0
    %203 = vmatprep.subr.bf16.mxu0 0
    %204 = vmatpush1.bf16.msra.mxu0 0
    %205 = vmatprep.subr.bf16.mxu0 0
    %206 = vmatpush1.bf16.msra.mxu0 0
    %207 = vmatprep.subr.bf16.mxu0 %v149
    %208 = vmatpush1.bf16.msra.mxu0 %v146
    %209 = vmatprep.subr.bf16.mxu0 0
    %210 = vmatpush2.bf16.msra.mxu0 0
    %211 = vmatprep.subr.bf16.mxu0 0
    %212 = vmatpush2.bf16.msra.mxu0 0
    %213 = vmatprep.subr.bf16.mxu0 0
    %214 = vmatpush2.bf16.msra.mxu0 0
    %215 = vmatprep.subr.bf16.mxu0 0
    %216 = vmatpush2.bf16.msra.mxu0 0
    %217 = vmatprep.subr.bf16.mxu0 0
    %218 = vmatpush2.bf16.msra.mxu0 0
    %219 = vmatprep.subr.bf16.mxu0 0
    %220 = vmatpush2.bf16.msra.mxu0 0
    %221 = vmatprep.subr.bf16.mxu0 0
    %222 = vmatpush2.bf16.msra.mxu0 0
    %223 = vmatprep.subr.bf16.mxu0 0
    %224 = vmatpush2.bf16.msra.mxu0 0
    %225 = vmatprep.mubr.bf16.mxu0 0
    %226 = vmatmul.mubr.bf16.gmra.mxu0 %v142
    %v227 = vpop.f32.mrf.mxu0
    %v228 = vadd.f32 0.0, %v227
    %v229 = vpop.f32.mrf.mxu0
    %v230 = vadd.f32 0.0, %v229
    %v231 = vpop.f32.mrf.mxu0
    %v232 = vpop.f32.mrf.mxu0
    %233 = vdwg.mxu0
    %234 = vmatprep.subr.bf16.mxu0 0
    %235 = vmatpush1.bf16.msra.mxu0 0
    %236 = vmatprep.subr.bf16.mxu0 0
    %237 = vmatpush1.bf16.msra.mxu0 0
    %238 = vmatprep.subr.bf16.mxu0 0
    %239 = vmatpush1.bf16.msra.mxu0 0
    %240 = vmatprep.subr.bf16.mxu0 0
    %241 = vmatpush1.bf16.msra.mxu0 0
    %242 = vmatprep.subr.bf16.mxu0 0
    %243 = vmatpush1.bf16.msra.mxu0 0
    %244 = vmatprep.subr.bf16.mxu0 0
    %245 = vmatpush1.bf16.msra.mxu0 0
    %246 = vmatprep.subr.bf16.mxu0 0
    %247 = vmatpush1.bf16.msra.mxu0 0
    %248 = vmatprep.subr.bf16.mxu0 %v155
    %249 = vmatpush1.bf16.msra.mxu0 %v152
    %250 = vmatprep.subr.bf16.mxu0 0
    %251 = vmatpush2.bf16.msra.mxu0 0
    %252 = vmatprep.subr.bf16.mxu0 0
    %253 = vmatpush2.bf16.msra.mxu0 0
    %254 = vmatprep.subr.bf16.mxu0 0
    %255 = vmatpush2.bf16.msra.mxu0 0
    %256 = vmatprep.subr.bf16.mxu0 0
    %257 = vmatpush2.bf16.msra.mxu0 0
    %258 = vmatprep.subr.bf16.mxu0 0
    %259 = vmatpush2.bf16.msra.mxu0 0
    %260 = vmatprep.subr.bf16.mxu0 0
    %261 = vmatpush2.bf16.msra.mxu0 0
    %262 = vmatprep.subr.bf16.mxu0 0
    %263 = vmatpush2.bf16.msra.mxu0 0
    %264 = vmatprep.subr.bf16.mxu0 0
    %265 = vmatpush2.bf16.msra.mxu0 0
    %266 = vmatprep.mubr.bf16.mxu0 0
    %267 = vmatmul.mubr.bf16.gmra.mxu0 %v142
    %v268 = vpop.f32.mrf.mxu0
    %v269 = vadd.f32 0.0, %v268
    %v270 = vpop.f32.mrf.mxu0
    %v271 = vadd.f32 0.0, %v270
    %v272 = vpop.f32.mrf.mxu0
    %v273 = vpop.f32.mrf.mxu0
    %274 = vdwg.mxu0
    %275 = vmatprep.subr.bf16.mxu0 0
    %276 = vmatpush1.bf16.msra.mxu0 0
    %277 = vmatprep.subr.bf16.mxu0 0
    %278 = vmatpush1.bf16.msra.mxu0 0
    %279 = vmatprep.subr.bf16.mxu0 0
    %280 = vmatpush1.bf16.msra.mxu0 0
    %281 = vmatprep.subr.bf16.mxu0 0
    %282 = vmatpush1.bf16.msra.mxu0 0
    %283 = vmatprep.subr.bf16.mxu0 0
    %284 = vmatpush1.bf16.msra.mxu0 0
    %285 = vmatprep.subr.bf16.mxu0 0
    %286 = vmatpush1.bf16.msra.mxu0 0
    %287 = vmatprep.subr.bf16.mxu0 0
    %288 = vmatpush1.bf16.msra.mxu0 0
    %289 = vmatprep.subr.bf16.mxu0 %v161
    %290 = vmatpush1.bf16.msra.mxu0 %v158
    %291 = vmatprep.subr.bf16.mxu0 0
    %292 = vmatpush2.bf16.msra.mxu0 0
    %293 = vmatprep.subr.bf16.mxu0 0
    %294 = vmatpush2.bf16.msra.mxu0 0
    %295 = vmatprep.subr.bf16.mxu0 0
    %296 = vmatpush2.bf16.msra.mxu0 0
    %297 = vmatprep.subr.bf16.mxu0 0
    %298 = vmatpush2.bf16.msra.mxu0 0
    %299 = vmatprep.subr.bf16.mxu0 0
    %300 = vmatpush2.bf16.msra.mxu0 0
    %301 = vmatprep.subr.bf16.mxu0 0
    %302 = vmatpush2.bf16.msra.mxu0 0
    %303 = vmatprep.subr.bf16.mxu0 0
    %304 = vmatpush2.bf16.msra.mxu0 0
    %305 = vmatprep.subr.bf16.mxu0 0
    %306 = vmatpush2.bf16.msra.mxu0 0
    %307 = vmatprep.mubr.bf16.mxu0 0
    %308 = vmatmul.mubr.bf16.gmra.mxu0 %v142
    %v309 = vpop.f32.mrf.mxu0
    %v310 = vadd.f32 0.0, %v309
    %v311 = vpop.f32.mrf.mxu0
    %v312 = vadd.f32 0.0, %v311
    %v313 = vpop.f32.mrf.mxu0
    %v314 = vpop.f32.mrf.mxu0
    %315 = vdwg.mxu0
    %316 = vmatprep.subr.bf16.mxu0 0
    %317 = vmatpush1.bf16.msra.mxu0 0
    %318 = vmatprep.subr.bf16.mxu0 0
    %319 = vmatpush1.bf16.msra.mxu0 0
    %320 = vmatprep.subr.bf16.mxu0 0
    %321 = vmatpush1.bf16.msra.mxu0 0
    %322 = vmatprep.subr.bf16.mxu0 0
    %323 = vmatpush1.bf16.msra.mxu0 0
    %324 = vmatprep.subr.bf16.mxu0 0
    %325 = vmatpush1.bf16.msra.mxu0 0
    %326 = vmatprep.subr.bf16.mxu0 0
    %327 = vmatpush1.bf16.msra.mxu0 0
    %328 = vmatprep.subr.bf16.mxu0 0
    %329 = vmatpush1.bf16.msra.mxu0 0
    %330 = vmatprep.subr.bf16.mxu0 %v167
    %331 = vmatpush1.bf16.msra.mxu0 %v164
    %332 = vmatprep.subr.bf16.mxu0 0
    %333 = vmatpush2.bf16.msra.mxu0 0
    %334 = vmatprep.subr.bf16.mxu0 0
    %335 = vmatpush2.bf16.msra.mxu0 0
    %336 = vmatprep.subr.bf16.mxu0 0
    %337 = vmatpush2.bf16.msra.mxu0 0
    %338 = vmatprep.subr.bf16.mxu0 0
    %339 = vmatpush2.bf16.msra.mxu0 0
    %340 = vmatprep.subr.bf16.mxu0 0
    %341 = vmatpush2.bf16.msra.mxu0 0
    %342 = vmatprep.subr.bf16.mxu0 0
    %343 = vmatpush2.bf16.msra.mxu0 0
    %344 = vmatprep.subr.bf16.mxu0 0
    %345 = vmatpush2.bf16.msra.mxu0 0
    %346 = vmatprep.subr.bf16.mxu0 0
    %347 = vmatpush2.bf16.msra.mxu0 0
    %348 = vmatprep.mubr.bf16.mxu0 0
    %349 = vmatmul.mubr.bf16.gmra.mxu0 %v142
    %v350 = vpop.f32.mrf.mxu0
    %v351 = vadd.f32 0.0, %v350
    %v352 = vpop.f32.mrf.mxu0
    %v353 = vadd.f32 0.0, %v352
    %v354 = vpop.f32.mrf.mxu0
    %v355 = vpop.f32.mrf.mxu0
    %356 = vdwg.mxu0
    %357 = vmatprep.subr.bf16.mxu0 0
    %358 = vmatpush1.bf16.msra.mxu0 0
    %359 = vmatprep.subr.bf16.mxu0 0
    %360 = vmatpush1.bf16.msra.mxu0 0
    %361 = vmatprep.subr.bf16.mxu0 0
    %362 = vmatpush1.bf16.msra.mxu0 0
    %363 = vmatprep.subr.bf16.mxu0 0
    %364 = vmatpush1.bf16.msra.mxu0 0
    %365 = vmatprep.subr.bf16.mxu0 0
    %366 = vmatpush1.bf16.msra.mxu0 0
    %367 = vmatprep.subr.bf16.mxu0 0
    %368 = vmatpush1.bf16.msra.mxu0 0
    %369 = vmatprep.subr.bf16.mxu0 0
    %370 = vmatpush1.bf16.msra.mxu0 0
    %371 = vmatprep.subr.bf16.mxu0 %v173
    %372 = vmatpush1.bf16.msra.mxu0 %v170
    %373 = vmatprep.subr.bf16.mxu0 0
    %374 = vmatpush2.bf16.msra.mxu0 0
    %375 = vmatprep.subr.bf16.mxu0 0
    %376 = vmatpush2.bf16.msra.mxu0 0
    %377 = vmatprep.subr.bf16.mxu0 0
    %378 = vmatpush2.bf16.msra.mxu0 0
    %379 = vmatprep.subr.bf16.mxu0 0
    %380 = vmatpush2.bf16.msra.mxu0 0
    %381 = vmatprep.subr.bf16.mxu0 0
    %382 = vmatpush2.bf16.msra.mxu0 0
    %383 = vmatprep.subr.bf16.mxu0 0
    %384 = vmatpush2.bf16.msra.mxu0 0
    %385 = vmatprep.subr.bf16.mxu0 0
    %386 = vmatpush2.bf16.msra.mxu0 0
    %387 = vmatprep.subr.bf16.mxu0 0
    %388 = vmatpush2.bf16.msra.mxu0 0
    %389 = vmatprep.mubr.bf16.mxu0 0
    %390 = vmatmul.mubr.bf16.gmra.mxu0 %v142
    %v391 = vpop.f32.mrf.mxu0
    %v392 = vadd.f32 0.0, %v391
    %v393 = vpop.f32.mrf.mxu0
    %v394 = vadd.f32 0.0, %v393
    %v395 = vpop.f32.mrf.mxu0
    %v396 = vpop.f32.mrf.mxu0
    %397 = vdwg.mxu0
    %398 = vmatprep.subr.bf16.mxu0 0
    %399 = vmatpush1.bf16.msra.mxu0 0
    %400 = vmatprep.subr.bf16.mxu0 0
    %401 = vmatpush1.bf16.msra.mxu0 0
    %402 = vmatprep.subr.bf16.mxu0 0
    %403 = vmatpush1.bf16.msra.mxu0 0
    %404 = vmatprep.subr.bf16.mxu0 0
    %405 = vmatpush1.bf16.msra.mxu0 0
    %406 = vmatprep.subr.bf16.mxu0 0
    %407 = vmatpush1.bf16.msra.mxu0 0
    %408 = vmatprep.subr.bf16.mxu0 0
    %409 = vmatpush1.bf16.msra.mxu0 0
    %410 = vmatprep.subr.bf16.mxu0 0
    %411 = vmatpush1.bf16.msra.mxu0 0
    %412 = vmatprep.subr.bf16.mxu0 %v179
    %413 = vmatpush1.bf16.msra.mxu0 %v176
    %414 = vmatprep.subr.bf16.mxu0 0
    %415 = vmatpush2.bf16.msra.mxu0 0
    %416 = vmatprep.subr.bf16.mxu0 0
    %417 = vmatpush2.bf16.msra.mxu0 0
    %418 = vmatprep.subr.bf16.mxu0 0
    %419 = vmatpush2.bf16.msra.mxu0 0
    %420 = vmatprep.subr.bf16.mxu0 0
    %421 = vmatpush2.bf16.msra.mxu0 0
    %422 = vmatprep.subr.bf16.mxu0 0
    %423 = vmatpush2.bf16.msra.mxu0 0
    %424 = vmatprep.subr.bf16.mxu0 0
    %425 = vmatpush2.bf16.msra.mxu0 0
    %426 = vmatprep.subr.bf16.mxu0 0
    %427 = vmatpush2.bf16.msra.mxu0 0
    %428 = vmatprep.subr.bf16.mxu0 0
    %429 = vmatpush2.bf16.msra.mxu0 0
    %430 = vmatprep.mubr.bf16.mxu0 0
    %431 = vmatmul.mubr.bf16.gmra.mxu0 %v142
    %v432 = vpop.f32.mrf.mxu0
    %v433 = vadd.f32 0.0, %v432
    %v434 = vpop.f32.mrf.mxu0
    %v435 = vadd.f32 0.0, %v434
    %v436 = vpop.f32.mrf.mxu0
    %v437 = vpop.f32.mrf.mxu0
    %438 = vdwg.mxu0
    %439 = vmatprep.subr.bf16.mxu0 0
    %440 = vmatpush1.bf16.msra.mxu0 0
    %441 = vmatprep.subr.bf16.mxu0 0
    %442 = vmatpush1.bf16.msra.mxu0 0
    %443 = vmatprep.subr.bf16.mxu0 0
    %444 = vmatpush1.bf16.msra.mxu0 0
    %445 = vmatprep.subr.bf16.mxu0 0
    %446 = vmatpush1.bf16.msra.mxu0 0
    %447 = vmatprep.subr.bf16.mxu0 0
    %448 = vmatpush1.bf16.msra.mxu0 0
    %449 = vmatprep.subr.bf16.mxu0 0
    %450 = vmatpush1.bf16.msra.mxu0 0
    %451 = vmatprep.subr.bf16.mxu0 0
    %452 = vmatpush1.bf16.msra.mxu0 0
    %453 = vmatprep.subr.bf16.mxu0 %v185
    %454 = vmatpush1.bf16.msra.mxu0 %v182
    %455 = vmatprep.subr.bf16.mxu0 0
    %456 = vmatpush2.bf16.msra.mxu0 0
    %457 = vmatprep.subr.bf16.mxu0 0
    %458 = vmatpush2.bf16.msra.mxu0 0
    %459 = vmatprep.subr.bf16.mxu0 0
    %460 = vmatpush2.bf16.msra.mxu0 0
    %461 = vmatprep.subr.bf16.mxu0 0
    %462 = vmatpush2.bf16.msra.mxu0 0
    %463 = vmatprep.subr.bf16.mxu0 0
    %464 = vmatpush2.bf16.msra.mxu0 0
    %465 = vmatprep.subr.bf16.mxu0 0
    %466 = vmatpush2.bf16.msra.mxu0 0
    %467 = vmatprep.subr.bf16.mxu0 0
    %468 = vmatpush2.bf16.msra.mxu0 0
    %469 = vmatprep.subr.bf16.mxu0 0
    %470 = vmatpush2.bf16.msra.mxu0 0
    %471 = vmatprep.mubr.bf16.mxu0 0
    %472 = vmatmul.mubr.bf16.gmra.mxu0 %v142
    %v473 = vpop.f32.mrf.mxu0
    %v474 = vadd.f32 0.0, %v473
    %v475 = vpop.f32.mrf.mxu0
    %v476 = vadd.f32 0.0, %v475
    %v477 = vpop.f32.mrf.mxu0
    %v478 = vpop.f32.mrf.mxu0
    %479 = vdwg.mxu0
    %480 = vmatprep.subr.bf16.mxu0 0
    %481 = vmatpush1.bf16.msra.mxu0 0
    %482 = vmatprep.subr.bf16.mxu0 0
    %483 = vmatpush1.bf16.msra.mxu0 0
    %484 = vmatprep.subr.bf16.mxu0 0
    %485 = vmatpush1.bf16.msra.mxu0 0
    %486 = vmatprep.subr.bf16.mxu0 0
    %487 = vmatpush1.bf16.msra.mxu0 0
    %488 = vmatprep.subr.bf16.mxu0 0
    %489 = vmatpush1.bf16.msra.mxu0 0
    %490 = vmatprep.subr.bf16.mxu0 0
    %491 = vmatpush1.bf16.msra.mxu0 0
    %492 = vmatprep.subr.bf16.mxu0 0
    %493 = vmatpush1.bf16.msra.mxu0 0
    %494 = vmatprep.subr.bf16.mxu0 %v191
    %495 = vmatpush1.bf16.msra.mxu0 %v188
    %496 = vmatprep.subr.bf16.mxu0 0
    %497 = vmatpush2.bf16.msra.mxu0 0
    %498 = vmatprep.subr.bf16.mxu0 0
    %499 = vmatpush2.bf16.msra.mxu0 0
    %500 = vmatprep.subr.bf16.mxu0 0
    %501 = vmatpush2.bf16.msra.mxu0 0
    %502 = vmatprep.subr.bf16.mxu0 0
    %503 = vmatpush2.bf16.msra.mxu0 0
    %504 = vmatprep.subr.bf16.mxu0 0
    %505 = vmatpush2.bf16.msra.mxu0 0
    %506 = vmatprep.subr.bf16.mxu0 0
    %507 = vmatpush2.bf16.msra.mxu0 0
    %508 = vmatprep.subr.bf16.mxu0 0
    %509 = vmatpush2.bf16.msra.mxu0 0
    %510 = vmatprep.subr.bf16.mxu0 0
    %511 = vmatpush2.bf16.msra.mxu0 0
    %512 = vmatprep.mubr.bf16.mxu0 0
    %513 = vmatmul.mubr.bf16.gmra.mxu0 %v142
    %v514 = vpop.f32.mrf.mxu0
    %v515 = vadd.f32 0.0, %v514
    %v516 = vpop.f32.mrf.mxu0
    %v517 = vadd.f32 0.0, %v516
    %v518 = vpop.f32.mrf.mxu0
    %v519 = vpop.f32.mrf.mxu0
    %520 = vdwg.mxu0
    %v521 = vmax.f32 %v228, 0.0
    %v522 = vmax.f32 %v230, 0.0
    %v523 = vmax.f32 %v269, 0.0
    %v524 = vmax.f32 %v271, 0.0
    %v525 = vmax.f32 %v310, 0.0
    %v526 = vmax.f32 %v312, 0.0
    %v527 = vmax.f32 %v351, 0.0
    %v528 = vmax.f32 %v353, 0.0
    %v529 = vmax.f32 %v392, 0.0
    %v530 = vmax.f32 %v394, 0.0
    %v531 = vmax.f32 %v433, 0.0
    %v532 = vmax.f32 %v435, 0.0
    %v533 = vmax.f32 %v474, 0.0
    %v534 = vmax.f32 %v476, 0.0
    %v535 = vmax.f32 %v515, 0.0
    %v536 = vmax.f32 %v517, 0.0
    %v537 = vpack.c.bf16 %v521, %v521
    %v538 = vpack.c.bf16 %v522, %v522
    %v539 = vpack.c.bf16 %v523, %v523
    %v540 = vpack.c.bf16 %v524, %v524
    %v541 = vpack.c.bf16 %v525, %v525
    %v542 = vpack.c.bf16 %v526, %v526
    %v543 = vpack.c.bf16 %v527, %v527
    %v544 = vpack.c.bf16 %v528, %v528
    %v545 = vpack.c.bf16 %v529, %v529
    %v546 = vpack.c.bf16 %v530, %v530
    %v547 = vpack.c.bf16 %v531, %v531
    %v548 = vpack.c.bf16 %v532, %v532
    %v549 = vpack.c.bf16 %v533, %v533
    %v550 = vpack.c.bf16 %v534, %v534
    %v551 = vpack.c.bf16 %v535, %v535
    %v552 = vpack.c.bf16 %v536, %v536
    %v553 = vld [vmem:[#allocation2 + $0x80] sm:$0xff]
    %v554 = vld [vmem:[#allocation2 + $0x88] sm:$0xff]
    %v555 = vld [vmem:[#allocation2 + $0x90] sm:$0xff]
    %v556 = vld [vmem:[#allocation2 + $0x98] sm:$0xff]
    %v557 = vld [vmem:[#allocation2 + $0xa0] sm:$0xff]
    %v558 = vld [vmem:[#allocation2 + $0xa8] sm:$0xff]
    %v559 = vld [vmem:[#allocation2 + $0xb0] sm:$0xff]
    %v560 = vld [vmem:[#allocation2 + $0xb8] sm:$0xff]
    %v561 = vld [vmem:[#allocation2 + $0xc0] sm:$0xff]
    %v562 = vld [vmem:[#allocation2 + $0xc8] sm:$0xff]
    %v563 = vld [vmem:[#allocation2 + $0xd0] sm:$0xff]
    %v564 = vld [vmem:[#allocation2 + $0xd8] sm:$0xff]
    %v565 = vld [vmem:[#allocation2 + $0xe0] sm:$0xff]
    %v566 = vld [vmem:[#allocation2 + $0xe8] sm:$0xff]
    %v567 = vld [vmem:[#allocation2 + $0xf0] sm:$0xff]
    %v568 = vld [vmem:[#allocation2 + $0xf8] sm:$0xff]
    %v569 = vld [vmem:[#allocation2 + $0x100] sm:$0xff]
    %v570 = vld [vmem:[#allocation2 + $0x108] sm:$0xff]
    %v571 = vld [vmem:[#allocation2 + $0x110] sm:$0xff]
    %v572 = vld [vmem:[#allocation2 + $0x118] sm:$0xff]
    %v573 = vld [vmem:[#allocation2 + $0x120] sm:$0xff]
    %v574 = vld [vmem:[#allocation2 + $0x128] sm:$0xff]
    %v575 = vld [vmem:[#allocation2 + $0x130] sm:$0xff]
    %v576 = vld [vmem:[#allocation2 + $0x138] sm:$0xff]
    %v577 = vld [vmem:[#allocation2 + $0x140] sm:$0xff]
    %v578 = vld [vmem:[#allocation2 + $0x148] sm:$0xff]
    %v579 = vld [vmem:[#allocation2 + $0x150] sm:$0xff]
    %v580 = vld [vmem:[#allocation2 + $0x158] sm:$0xff]
    %v581 = vld [vmem:[#allocation2 + $0x160] sm:$0xff]
    %v582 = vld [vmem:[#allocation2 + $0x168] sm:$0xff]
    %v583 = vld [vmem:[#allocation2 + $0x170] sm:$0xff]
    %v584 = vld [vmem:[#allocation2 + $0x178] sm:$0xff]
    %v585 = vld [vmem:[#allocation2 + $0x180] sm:$0xff]
    %v586 = vld [vmem:[#allocation2 + $0x188] sm:$0xff]
    %v587 = vld [vmem:[#allocation2 + $0x190] sm:$0xff]
    %v588 = vld [vmem:[#allocation2 + $0x198] sm:$0xff]
    %v589 = vld [vmem:[#allocation2 + $0x1a0] sm:$0xff]
    %v590 = vld [vmem:[#allocation2 + $0x1a8] sm:$0xff]
    %v591 = vld [vmem:[#allocation2 + $0x1b0] sm:$0xff]
    %v592 = vld [vmem:[#allocation2 + $0x1b8] sm:$0xff]
    %v593 = vld [vmem:[#allocation2 + $0x1c0] sm:$0xff]
    %v594 = vld [vmem:[#allocation2 + $0x1c8] sm:$0xff]
    %v595 = vld [vmem:[#allocation2 + $0x1d0] sm:$0xff]
    %v596 = vld [vmem:[#allocation2 + $0x1d8] sm:$0xff]
    %v597 = vld [vmem:[#allocation2 + $0x1e0] sm:$0xff]
    %v598 = vld [vmem:[#allocation2 + $0x1e8] sm:$0xff]
    %v599 = vld [vmem:[#allocation2 + $0x1f0] sm:$0xff]
    %v600 = vld [vmem:[#allocation2 + $0x1f8] sm:$0xff]
    %v601 = vld [vmem:[#allocation2 + $0x200] sm:$0xff]
    %v602 = vld [vmem:[#allocation2 + $0x208] sm:$0xff]
    %v603 = vld [vmem:[#allocation2 + $0x210] sm:$0xff]
    %v604 = vld [vmem:[#allocation2 + $0x218] sm:$0xff]
    %v605 = vld [vmem:[#allocation2 + $0x220] sm:$0xff]
    %v606 = vld [vmem:[#allocation2 + $0x228] sm:$0xff]
    %v607 = vld [vmem:[#allocation2 + $0x230] sm:$0xff]
    %v608 = vld [vmem:[#allocation2 + $0x238] sm:$0xff]
    %v609 = vld [vmem:[#allocation2 + $0x240] sm:$0xff]
    %v610 = vld [vmem:[#allocation2 + $0x248] sm:$0xff]
    %v611 = vld [vmem:[#allocation2 + $0x250] sm:$0xff]
    %v612 = vld [vmem:[#allocation2 + $0x258] sm:$0xff]
    %v613 = vld [vmem:[#allocation2 + $0x260] sm:$0xff]
    %v614 = vld [vmem:[#allocation2 + $0x268] sm:$0xff]
    %v615 = vld [vmem:[#allocation2 + $0x270] sm:$0xff]
    %v616 = vld [vmem:[#allocation2 + $0x278] sm:$0xff]
    %v617 = vld [vmem:[%s5] sm:$0x1]
    %v618 = vlaneseq
    %v619 = vshrl.u32 %v618, 7
    %v620 = vsub.s32 0, %v619
    %v621 = vrot.slane %v617, %v620
    %v686 = vunpack.c.l.b16 %v553
    %v687 = vunpack.c.h.b16 %v553
    %v688 = vunpack.c.l.b16 %v554
    %v689 = vunpack.c.h.b16 %v554
    %v690 = vunpack.c.l.b16 %v555
    %v691 = vunpack.c.h.b16 %v555
    %v692 = vunpack.c.l.b16 %v556
    %v693 = vunpack.c.h.b16 %v556
    %v694 = vunpack.c.l.b16 %v557
    %v695 = vunpack.c.h.b16 %v557
    %v696 = vunpack.c.l.b16 %v558
    %v697 = vunpack.c.h.b16 %v558
    %v698 = vunpack.c.l.b16 %v559
    %v699 = vunpack.c.h.b16 %v559
    %v700 = vunpack.c.l.b16 %v560
    %v701 = vunpack.c.h.b16 %v560
    %v702 = vunpack.c.l.b16 %v561
    %v703 = vunpack.c.h.b16 %v561
    %v704 = vunpack.c.l.b16 %v562
    %v705 = vunpack.c.h.b16 %v562
    %v706 = vunpack.c.l.b16 %v563
    %v707 = vunpack.c.h.b16 %v563
    %v708 = vunpack.c.l.b16 %v564
    %v709 = vunpack.c.h.b16 %v564
    %v710 = vunpack.c.l.b16 %v565
    %v711 = vunpack.c.h.b16 %v565
    %v712 = vunpack.c.l.b16 %v566
    %v713 = vunpack.c.h.b16 %v566
    %v714 = vunpack.c.l.b16 %v567
    %v715 = vunpack.c.h.b16 %v567
    %v716 = vunpack.c.l.b16 %v568
    %v717 = vunpack.c.h.b16 %v568
    %v718 = vunpack.c.l.b16 %v569
    %v719 = vunpack.c.h.b16 %v569
    %v720 = vunpack.c.l.b16 %v570
    %v721 = vunpack.c.h.b16 %v570
    %v722 = vunpack.c.l.b16 %v571
    %v723 = vunpack.c.h.b16 %v571
    %v724 = vunpack.c.l.b16 %v572
    %v725 = vunpack.c.h.b16 %v572
    %v726 = vunpack.c.l.b16 %v573
    %v727 = vunpack.c.h.b16 %v573
    %v728 = vunpack.c.l.b16 %v574
    %v729 = vunpack.c.h.b16 %v574
    %v730 = vunpack.c.l.b16 %v575
    %v731 = vunpack.c.h.b16 %v575
    %v732 = vunpack.c.l.b16 %v576
    %v733 = vunpack.c.h.b16 %v576
    %v734 = vunpack.c.l.b16 %v577
    %v735 = vunpack.c.h.b16 %v577
    %v736 = vunpack.c.l.b16 %v578
    %v737 = vunpack.c.h.b16 %v578
    %v738 = vunpack.c.l.b16 %v579
    %v739 = vunpack.c.h.b16 %v579
    %v740 = vunpack.c.l.b16 %v580
    %v741 = vunpack.c.h.b16 %v580
    %v742 = vunpack.c.l.b16 %v581
    %v743 = vunpack.c.h.b16 %v581
    %v744 = vunpack.c.l.b16 %v582
    %v745 = vunpack.c.h.b16 %v582
    %v746 = vunpack.c.l.b16 %v583
    %v747 = vunpack.c.h.b16 %v583
    %v748 = vunpack.c.l.b16 %v584
    %v749 = vunpack.c.h.b16 %v584
    %v750 = vunpack.c.l.b16 %v585
    %v751 = vunpack.c.h.b16 %v585
    %v752 = vunpack.c.l.b16 %v586
    %v753 = vunpack.c.h.b16 %v586
    %v754 = vunpack.c.l.b16 %v587
    %v755 = vunpack.c.h.b16 %v587
    %v756 = vunpack.c.l.b16 %v588
    %v757 = vunpack.c.h.b16 %v588
    %v758 = vunpack.c.l.b16 %v589
    %v759 = vunpack.c.h.b16 %v589
    %v760 = vunpack.c.l.b16 %v590
    %v761 = vunpack.c.h.b16 %v590
    %v762 = vunpack.c.l.b16 %v591
    %v763 = vunpack.c.h.b16 %v591
    %v764 = vunpack.c.l.b16 %v592
    %v765 = vunpack.c.h.b16 %v592
    %v766 = vunpack.c.l.b16 %v593
    %v767 = vunpack.c.h.b16 %v593
    %v768 = vunpack.c.l.b16 %v594
    %v769 = vunpack.c.h.b16 %v594
    %v770 = vunpack.c.l.b16 %v595
    %v771 = vunpack.c.h.b16 %v595
    %v772 = vunpack.c.l.b16 %v596
    %v773 = vunpack.c.h.b16 %v596
    %v774 = vunpack.c.l.b16 %v597
    %v775 = vunpack.c.h.b16 %v597
    %v776 = vunpack.c.l.b16 %v598
    %v777 = vunpack.c.h.b16 %v598
    %v778 = vunpack.c.l.b16 %v599
    %v779 = vunpack.c.h.b16 %v599
    %v780 = vunpack.c.l.b16 %v600
    %v781 = vunpack.c.h.b16 %v600
    %v782 = vunpack.c.l.b16 %v601
    %v783 = vunpack.c.h.b16 %v601
    %v784 = vunpack.c.l.b16 %v602
    %v785 = vunpack.c.h.b16 %v602
    %v786 = vunpack.c.l.b16 %v603
    %v787 = vunpack.c.h.b16 %v603
    %v788 = vunpack.c.l.b16 %v604
    %v789 = vunpack.c.h.b16 %v604
    %v790 = vunpack.c.l.b16 %v605
    %v791 = vunpack.c.h.b16 %v605
    %v792 = vunpack.c.l.b16 %v606
    %v793 = vunpack.c.h.b16 %v606
    %v794 = vunpack.c.l.b16 %v607
    %v795 = vunpack.c.h.b16 %v607
    %v796 = vunpack.c.l.b16 %v608
    %v797 = vunpack.c.h.b16 %v608
    %v798 = vunpack.c.l.b16 %v609
    %v799 = vunpack.c.h.b16 %v609
    %v800 = vunpack.c.l.b16 %v610
    %v801 = vunpack.c.h.b16 %v610
    %v802 = vunpack.c.l.b16 %v611
    %v803 = vunpack.c.h.b16 %v611
    %v804 = vunpack.c.l.b16 %v612
    %v805 = vunpack.c.h.b16 %v612
    %v806 = vunpack.c.l.b16 %v613
    %v807 = vunpack.c.h.b16 %v613
    %v808 = vunpack.c.l.b16 %v614
    %v809 = vunpack.c.h.b16 %v614
    %v810 = vunpack.c.l.b16 %v615
    %v811 = vunpack.c.h.b16 %v615
    %v812 = vunpack.c.l.b16 %v616
    %v813 = vunpack.c.h.b16 %v616
    %v814 = vpack.c.b16 %v702, %v686
    %v815 = vpack.c.b16 %v703, %v687
    %v816 = vpack.c.b16 %v704, %v688
    %v817 = vpack.c.b16 %v705, %v689
    %v818 = vpack.c.b16 %v706, %v690
    %v819 = vpack.c.b16 %v707, %v691
    %v820 = vpack.c.b16 %v708, %v692
    %v821 = vpack.c.b16 %v709, %v693
    %v822 = vpack.c.b16 %v710, %v694
    %v823 = vpack.c.b16 %v711, %v695
    %v824 = vpack.c.b16 %v712, %v696
    %v825 = vpack.c.b16 %v713, %v697
    %v826 = vpack.c.b16 %v714, %v698
    %v827 = vpack.c.b16 %v715, %v699
    %v828 = vpack.c.b16 %v716, %v700
    %v829 = vpack.c.b16 %v717, %v701
    %v830 = vpack.c.b16 %v734, %v718
    %v831 = vpack.c.b16 %v735, %v719
    %v832 = vpack.c.b16 %v736, %v720
    %v833 = vpack.c.b16 %v737, %v721
    %v834 = vpack.c.b16 %v738, %v722
    %v835 = vpack.c.b16 %v739, %v723
    %v836 = vpack.c.b16 %v740, %v724
    %v837 = vpack.c.b16 %v741, %v725
    %v838 = vpack.c.b16 %v742, %v726
    %v839 = vpack.c.b16 %v743, %v727
    %v840 = vpack.c.b16 %v744, %v728
    %v841 = vpack.c.b16 %v745, %v729
    %v842 = vpack.c.b16 %v746, %v730
    %v843 = vpack.c.b16 %v747, %v731
    %v844 = vpack.c.b16 %v748, %v732
    %v845 = vpack.c.b16 %v749, %v733
    %v846 = vpack.c.b16 %v766, %v750
    %v847 = vpack.c.b16 %v767, %v751
    %v848 = vpack.c.b16 %v768, %v752
    %v849 = vpack.c.b16 %v769, %v753
    %v850 = vpack.c.b16 %v770, %v754
    %v851 = vpack.c.b16 %v771, %v755
    %v852 = vpack.c.b16 %v772, %v756
    %v853 = vpack.c.b16 %v773, %v757
    %v854 = vpack.c.b16 %v774, %v758
    %v855 = vpack.c.b16 %v775, %v759
    %v856 = vpack.c.b16 %v776, %v760
    %v857 = vpack.c.b16 %v777, %v761
    %v858 = vpack.c.b16 %v778, %v762
    %v859 = vpack.c.b16 %v779, %v763
    %v860 = vpack.c.b16 %v780, %v764
    %v861 = vpack.c.b16 %v781, %v765
    %v862 = vpack.c.b16 %v798, %v782
    %v863 = vpack.c.b16 %v799, %v783
    %v864 = vpack.c.b16 %v800, %v784
    %v865 = vpack.c.b16 %v801, %v785
    %v866 = vpack.c.b16 %v802, %v786
    %v867 = vpack.c.b16 %v803, %v787
    %v868 = vpack.c.b16 %v804, %v788
    %v869 = vpack.c.b16 %v805, %v789
    %v870 = vpack.c.b16 %v806, %v790
    %v871 = vpack.c.b16 %v807, %v791
    %v872 = vpack.c.b16 %v808, %v792
    %v873 = vpack.c.b16 %v809, %v793
    %v874 = vpack.c.b16 %v810, %v794
    %v875 = vpack.c.b16 %v811, %v795
    %v876 = vpack.c.b16 %v812, %v796
    %v877 = vpack.c.b16 %v813, %v797
    %942 = vmatprep.subr.bf16.mxu0 0
    %943 = vmatpush1.bf16.xpose.msra.mxu0 0
    %944 = vmatprep.subr.bf16.mxu0 0
    %945 = vmatpush1.bf16.xpose.msra.mxu0 0
    %946 = vmatprep.subr.bf16.mxu0 0
    %947 = vmatpush1.bf16.xpose.msra.mxu0 0
    %948 = vmatprep.subr.bf16.mxu0 0
    %949 = vmatpush1.bf16.xpose.msra.mxu0 0
    %950 = vmatprep.subr.bf16.mxu0 %v863
    %951 = vmatpush1.bf16.xpose.msra.mxu0 %v862
    %952 = vmatprep.subr.bf16.mxu0 %v847
    %953 = vmatpush1.bf16.xpose.msra.mxu0 %v846
    %954 = vmatprep.subr.bf16.mxu0 %v831
    %955 = vmatpush1.bf16.xpose.msra.mxu0 %v830
    %956 = vmatprep.subr.bf16.mxu0 %v815
    %957 = vmatpush1.bf16.xpose.msra.mxu0 %v814
    %958 = vmatprep.subr.bf16.mxu0 0
    %959 = vmatpush2.bf16.xpose.msra.mxu0 0
    %960 = vmatprep.subr.bf16.mxu0 0
    %961 = vmatpush2.bf16.xpose.msra.mxu0 0
    %962 = vmatprep.subr.bf16.mxu0 0
    %963 = vmatpush2.bf16.xpose.msra.mxu0 0
    %964 = vmatprep.subr.bf16.mxu0 0
    %965 = vmatpush2.bf16.xpose.msra.mxu0 0
    %966 = vmatprep.subr.bf16.mxu0 0
    %967 = vmatpush2.bf16.xpose.msra.mxu0 0
    %968 = vmatprep.subr.bf16.mxu0 0
    %969 = vmatpush2.bf16.xpose.msra.mxu0 0
    %970 = vmatprep.subr.bf16.mxu0 0
    %971 = vmatpush2.bf16.xpose.msra.mxu0 0
    %972 = vmatprep.subr.bf16.mxu0 0
    %973 = vmatpush2.bf16.xpose.msra.mxu0 0
    %974 = vmatprep.mubr.bf16.mxu0 %v538
    %975 = vmatmul.mubr.bf16.gmra.mxu0 %v537
    %v976 = vpop.f32.mrf.mxu0
    %v977 = vadd.f32 %v621, %v976
    %v978 = vpop.f32.mrf.mxu0
    %v979 = vpop.f32.mrf.mxu0
    %v980 = vpop.f32.mrf.mxu0
    %981 = vdwg.mxu0
    %982 = vmatprep.subr.bf16.mxu0 0
    %983 = vmatpush1.bf16.xpose.msra.mxu0 0
    %984 = vmatprep.subr.bf16.mxu0 0
    %985 = vmatpush1.bf16.xpose.msra.mxu0 0
    %986 = vmatprep.subr.bf16.mxu0 0
    %987 = vmatpush1.bf16.xpose.msra.mxu0 0
    %988 = vmatprep.subr.bf16.mxu0 0
    %989 = vmatpush1.bf16.xpose.msra.mxu0 0
    %990 = vmatprep.subr.bf16.mxu0 %v865
    %991 = vmatpush1.bf16.xpose.msra.mxu0 %v864
    %992 = vmatprep.subr.bf16.mxu0 %v849
    %993 = vmatpush1.bf16.xpose.msra.mxu0 %v848
    %994 = vmatprep.subr.bf16.mxu0 %v833
    %995 = vmatpush1.bf16.xpose.msra.mxu0 %v832
    %996 = vmatprep.subr.bf16.mxu0 %v817
    %997 = vmatpush1.bf16.xpose.msra.mxu0 %v816
    %998 = vmatprep.subr.bf16.mxu0 0
    %999 = vmatpush2.bf16.xpose.msra.mxu0 0
    %1000 = vmatprep.subr.bf16.mxu0 0
    %1001 = vmatpush2.bf16.xpose.msra.mxu0 0
    %1002 = vmatprep.subr.bf16.mxu0 0
    %1003 = vmatpush2.bf16.xpose.msra.mxu0 0
    %1004 = vmatprep.subr.bf16.mxu0 0
    %1005 = vmatpush2.bf16.xpose.msra.mxu0 0
    %1006 = vmatprep.subr.bf16.mxu0 0
    %1007 = vmatpush2.bf16.xpose.msra.mxu0 0
    %1008 = vmatprep.subr.bf16.mxu0 0
    %1009 = vmatpush2.bf16.xpose.msra.mxu0 0
    %1010 = vmatprep.subr.bf16.mxu0 0
    %1011 = vmatpush2.bf16.xpose.msra.mxu0 0
    %1012 = vmatprep.subr.bf16.mxu0 0
    %1013 = vmatpush2.bf16.xpose.msra.mxu0 0
    %1014 = vmatprep.mubr.bf16.mxu0 %v540
    %1015 = vmatmul.mubr.bf16.gmra.mxu0 %v539
    %v1016 = vpop.f32.mrf.mxu0
    %v1017 = vadd.f32 %v977, %v1016
    %v1018 = vpop.f32.mrf.mxu0
    %v1019 = vpop.f32.mrf.mxu0
    %v1020 = vpop.f32.mrf.mxu0
    %1021 = vdwg.mxu0
    %1022 = vmatprep.subr.bf16.mxu0 0
    %1023 = vmatpush1.bf16.xpose.msra.mxu0 0
    %1024 = vmatprep.subr.bf16.mxu0 0
    %1025 = vmatpush1.bf16.xpose.msra.mxu0 0
    %1026 = vmatprep.subr.bf16.mxu0 0
    %1027 = vmatpush1.bf16.xpose.msra.mxu0 0
    %1028 = vmatprep.subr.bf16.mxu0 0
    %1029 = vmatpush1.bf16.xpose.msra.mxu0 0
    %1030 = vmatprep.subr.bf16.mxu0 %v867
    %1031 = vmatpush1.bf16.xpose.msra.mxu0 %v866
    %1032 = vmatprep.subr.bf16.mxu0 %v851
    %1033 = vmatpush1.bf16.xpose.msra.mxu0 %v850
    %1034 = vmatprep.subr.bf16.mxu0 %v835
    %1035 = vmatpush1.bf16.xpose.msra.mxu0 %v834
    %1036 = vmatprep.subr.bf16.mxu0 %v819
    %1037 = vmatpush1.bf16.xpose.msra.mxu0 %v818
    %1038 = vmatprep.subr.bf16.mxu0 0
    %1039 = vmatpush2.bf16.xpose.msra.mxu0 0
    %1040 = vmatprep.subr.bf16.mxu0 0
    %1041 = vmatpush2.bf16.xpose.msra.mxu0 0
    %1042 = vmatprep.subr.bf16.mxu0 0
    %1043 = vmatpush2.bf16.xpose.msra.mxu0 0
    %1044 = vmatprep.subr.bf16.mxu0 0
    %1045 = vmatpush2.bf16.xpose.msra.mxu0 0
    %1046 = vmatprep.subr.bf16.mxu0 0
    %1047 = vmatpush2.bf16.xpose.msra.mxu0 0
    %1048 = vmatprep.subr.bf16.mxu0 0
    %1049 = vmatpush2.bf16.xpose.msra.mxu0 0
    %1050 = vmatprep.subr.bf16.mxu0 0
    %1051 = vmatpush2.bf16.xpose.msra.mxu0 0
    %1052 = vmatprep.subr.bf16.mxu0 0
    %1053 = vmatpush2.bf16.xpose.msra.mxu0 0
    %1054 = vmatprep.mubr.bf16.mxu0 %v542
    %1055 = vmatmul.mubr.bf16.gmra.mxu0 %v541
    %v1056 = vpop.f32.mrf.mxu0
    %v1057 = vadd.f32 %v1017, %v1056
    %v1058 = vpop.f32.mrf.mxu0
    %v1059 = vpop.f32.mrf.mxu0
    %v1060 = vpop.f32.mrf.mxu0
    %1061 = vdwg.mxu0
    %1062 = vmatprep.subr.bf16.mxu0 0
    %1063 = vmatpush1.bf16.xpose.msra.mxu0 0
    %1064 = vmatprep.subr.bf16.mxu0 0
    %1065 = vmatpush1.bf16.xpose.msra.mxu0 0
    %1066 = vmatprep.subr.bf16.mxu0 0
    %1067 = vmatpush1.bf16.xpose.msra.mxu0 0
    %1068 = vmatprep.subr.bf16.mxu0 0
    %1069 = vmatpush1.bf16.xpose.msra.mxu0 0
    %1070 = vmatprep.subr.bf16.mxu0 %v869
    %1071 = vmatpush1.bf16.xpose.msra.mxu0 %v868
    %1072 = vmatprep.subr.bf16.mxu0 %v853
    %1073 = vmatpush1.bf16.xpose.msra.mxu0 %v852
    %1074 = vmatprep.subr.bf16.mxu0 %v837
    %1075 = vmatpush1.bf16.xpose.msra.mxu0 %v836
    %1076 = vmatprep.subr.bf16.mxu0 %v821
    %1077 = vmatpush1.bf16.xpose.msra.mxu0 %v820
    %1078 = vmatprep.subr.bf16.mxu0 0
    %1079 = vmatpush2.bf16.xpose.msra.mxu0 0
    %1080 = vmatprep.subr.bf16.mxu0 0
    %1081 = vmatpush2.bf16.xpose.msra.mxu0 0
    %1082 = vmatprep.subr.bf16.mxu0 0
    %1083 = vmatpush2.bf16.xpose.msra.mxu0 0
    %1084 = vmatprep.subr.bf16.mxu0 0
    %1085 = vmatpush2.bf16.xpose.msra.mxu0 0
    %1086 = vmatprep.subr.bf16.mxu0 0
    %1087 = vmatpush2.bf16.xpose.msra.mxu0 0
    %1088 = vmatprep.subr.bf16.mxu0 0
    %1089 = vmatpush2.bf16.xpose.msra.mxu0 0
    %1090 = vmatprep.subr.bf16.mxu0 0
    %1091 = vmatpush2.bf16.xpose.msra.mxu0 0
    %1092 = vmatprep.subr.bf16.mxu0 0
    %1093 = vmatpush2.bf16.xpose.msra.mxu0 0
    %1094 = vmatprep.mubr.bf16.mxu0 %v544
    %1095 = vmatmul.mubr.bf16.gmra.mxu0 %v543
    %v1096 = vpop.f32.mrf.mxu0
    %v1097 = vadd.f32 %v1057, %v1096
    %v1098 = vpop.f32.mrf.mxu0
    %v1099 = vpop.f32.mrf.mxu0
    %v1100 = vpop.f32.mrf.mxu0
    %1101 = vdwg.mxu0
    %1102 = vmatprep.subr.bf16.mxu0 0
    %1103 = vmatpush1.bf16.xpose.msra.mxu0 0
    %1104 = vmatprep.subr.bf16.mxu0 0
    %1105 = vmatpush1.bf16.xpose.msra.mxu0 0
    %1106 = vmatprep.subr.bf16.mxu0 0
    %1107 = vmatpush1.bf16.xpose.msra.mxu0 0
    %1108 = vmatprep.subr.bf16.mxu0 0
    %1109 = vmatpush1.bf16.xpose.msra.mxu0 0
    %1110 = vmatprep.subr.bf16.mxu0 %v871
    %1111 = vmatpush1.bf16.xpose.msra.mxu0 %v870
    %1112 = vmatprep.subr.bf16.mxu0 %v855
    %1113 = vmatpush1.bf16.xpose.msra.mxu0 %v854
    %1114 = vmatprep.subr.bf16.mxu0 %v839
    %1115 = vmatpush1.bf16.xpose.msra.mxu0 %v838
    %1116 = vmatprep.subr.bf16.mxu0 %v823
    %1117 = vmatpush1.bf16.xpose.msra.mxu0 %v822
    %1118 = vmatprep.subr.bf16.mxu0 0
    %1119 = vmatpush2.bf16.xpose.msra.mxu0 0
    %1120 = vmatprep.subr.bf16.mxu0 0
    %1121 = vmatpush2.bf16.xpose.msra.mxu0 0
    %1122 = vmatprep.subr.bf16.mxu0 0
    %1123 = vmatpush2.bf16.xpose.msra.mxu0 0
    %1124 = vmatprep.subr.bf16.mxu0 0
    %1125 = vmatpush2.bf16.xpose.msra.mxu0 0
    %1126 = vmatprep.subr.bf16.mxu0 0
    %1127 = vmatpush2.bf16.xpose.msra.mxu0 0
    %1128 = vmatprep.subr.bf16.mxu0 0
    %1129 = vmatpush2.bf16.xpose.msra.mxu0 0
    %1130 = vmatprep.subr.bf16.mxu0 0
    %1131 = vmatpush2.bf16.xpose.msra.mxu0 0
    %1132 = vmatprep.subr.bf16.mxu0 0
    %1133 = vmatpush2.bf16.xpose.msra.mxu0 0
    %1134 = vmatprep.mubr.bf16.mxu0 %v546
    %1135 = vmatmul.mubr.bf16.gmra.mxu0 %v545
    %v1136 = vpop.f32.mrf.mxu0
    %v1137 = vadd.f32 %v1097, %v1136
    %v1138 = vpop.f32.mrf.mxu0
    %v1139 = vpop.f32.mrf.mxu0
    %v1140 = vpop.f32.mrf.mxu0
    %1141 = vdwg.mxu0
    %1142 = vmatprep.subr.bf16.mxu0 0
    %1143 = vmatpush1.bf16.xpose.msra.mxu0 0
    %1144 = vmatprep.subr.bf16.mxu0 0
    %1145 = vmatpush1.bf16.xpose.msra.mxu0 0
    %1146 = vmatprep.subr.bf16.mxu0 0
    %1147 = vmatpush1.bf16.xpose.msra.mxu0 0
    %1148 = vmatprep.subr.bf16.mxu0 0
    %1149 = vmatpush1.bf16.xpose.msra.mxu0 0
    %1150 = vmatprep.subr.bf16.mxu0 %v873
    %1151 = vmatpush1.bf16.xpose.msra.mxu0 %v872
    %1152 = vmatprep.subr.bf16.mxu0 %v857
    %1153 = vmatpush1.bf16.xpose.msra.mxu0 %v856
    %1154 = vmatprep.subr.bf16.mxu0 %v841
    %1155 = vmatpush1.bf16.xpose.msra.mxu0 %v840
    %1156 = vmatprep.subr.bf16.mxu0 %v825
    %1157 = vmatpush1.bf16.xpose.msra.mxu0 %v824
    %1158 = vmatprep.subr.bf16.mxu0 0
    %1159 = vmatpush2.bf16.xpose.msra.mxu0 0
    %1160 = vmatprep.subr.bf16.mxu0 0
    %1161 = vmatpush2.bf16.xpose.msra.mxu0 0
    %1162 = vmatprep.subr.bf16.mxu0 0
    %1163 = vmatpush2.bf16.xpose.msra.mxu0 0
    %1164 = vmatprep.subr.bf16.mxu0 0
    %1165 = vmatpush2.bf16.xpose.msra.mxu0 0
    %1166 = vmatprep.subr.bf16.mxu0 0
    %1167 = vmatpush2.bf16.xpose.msra.mxu0 0
    %1168 = vmatprep.subr.bf16.mxu0 0
    %1169 = vmatpush2.bf16.xpose.msra.mxu0 0
    %1170 = vmatprep.subr.bf16.mxu0 0
    %1171 = vmatpush2.bf16.xpose.msra.mxu0 0
    %1172 = vmatprep.subr.bf16.mxu0 0
    %1173 = vmatpush2.bf16.xpose.msra.mxu0 0
    %1174 = vmatprep.mubr.bf16.mxu0 %v548
    %1175 = vmatmul.mubr.bf16.gmra.mxu0 %v547
    %v1176 = vpop.f32.mrf.mxu0
    %v1177 = vadd.f32 %v1137, %v1176
    %v1178 = vpop.f32.mrf.mxu0
    %v1179 = vpop.f32.mrf.mxu0
    %v1180 = vpop.f32.mrf.mxu0
    %1181 = vdwg.mxu0
    %1182 = vmatprep.subr.bf16.mxu0 0
    %1183 = vmatpush1.bf16.xpose.msra.mxu0 0
    %1184 = vmatprep.subr.bf16.mxu0 0
    %1185 = vmatpush1.bf16.xpose.msra.mxu0 0
    %1186 = vmatprep.subr.bf16.mxu0 0
    %1187 = vmatpush1.bf16.xpose.msra.mxu0 0
    %1188 = vmatprep.subr.bf16.mxu0 0
    %1189 = vmatpush1.bf16.xpose.msra.mxu0 0
    %1190 = vmatprep.subr.bf16.mxu0 %v875
    %1191 = vmatpush1.bf16.xpose.msra.mxu0 %v874
    %1192 = vmatprep.subr.bf16.mxu0 %v859
    %1193 = vmatpush1.bf16.xpose.msra.mxu0 %v858
    %1194 = vmatprep.subr.bf16.mxu0 %v843
    %1195 = vmatpush1.bf16.xpose.msra.mxu0 %v842
    %1196 = vmatprep.subr.bf16.mxu0 %v827
    %1197 = vmatpush1.bf16.xpose.msra.mxu0 %v826
    %1198 = vmatprep.subr.bf16.mxu0 0
    %1199 = vmatpush2.bf16.xpose.msra.mxu0 0
    %1200 = vmatprep.subr.bf16.mxu0 0
    %1201 = vmatpush2.bf16.xpose.msra.mxu0 0
    %1202 = vmatprep.subr.bf16.mxu0 0
    %1203 = vmatpush2.bf16.xpose.msra.mxu0 0
    %1204 = vmatprep.subr.bf16.mxu0 0
    %1205 = vmatpush2.bf16.xpose.msra.mxu0 0
    %1206 = vmatprep.subr.bf16.mxu0 0
    %1207 = vmatpush2.bf16.xpose.msra.mxu0 0
    %1208 = vmatprep.subr.bf16.mxu0 0
    %1209 = vmatpush2.bf16.xpose.msra.mxu0 0
    %1210 = vmatprep.subr.bf16.mxu0 0
    %1211 = vmatpush2.bf16.xpose.msra.mxu0 0
    %1212 = vmatprep.subr.bf16.mxu0 0
    %1213 = vmatpush2.bf16.xpose.msra.mxu0 0
    %1214 = vmatprep.mubr.bf16.mxu0 %v550
    %1215 = vmatmul.mubr.bf16.gmra.mxu0 %v549
    %v1216 = vpop.f32.mrf.mxu0
    %v1217 = vadd.f32 %v1177, %v1216
    %v1218 = vpop.f32.mrf.mxu0
    %v1219 = vpop.f32.mrf.mxu0
    %v1220 = vpop.f32.mrf.mxu0
    %1221 = vdwg.mxu0
    %1222 = vmatprep.subr.bf16.mxu0 0
    %1223 = vmatpush1.bf16.xpose.msra.mxu0 0
    %1224 = vmatprep.subr.bf16.mxu0 0
    %1225 = vmatpush1.bf16.xpose.msra.mxu0 0
    %1226 = vmatprep.subr.bf16.mxu0 0
    %1227 = vmatpush1.bf16.xpose.msra.mxu0 0
    %1228 = vmatprep.subr.bf16.mxu0 0
    %1229 = vmatpush1.bf16.xpose.msra.mxu0 0
    %1230 = vmatprep.subr.bf16.mxu0 %v877
    %1231 = vmatpush1.bf16.xpose.msra.mxu0 %v876
    %1232 = vmatprep.subr.bf16.mxu0 %v861
    %1233 = vmatpush1.bf16.xpose.msra.mxu0 %v860
    %1234 = vmatprep.subr.bf16.mxu0 %v845
    %1235 = vmatpush1.bf16.xpose.msra.mxu0 %v844
    %1236 = vmatprep.subr.bf16.mxu0 %v829
    %1237 = vmatpush1.bf16.xpose.msra.mxu0 %v828
    %1238 = vmatprep.subr.bf16.mxu0 0
    %1239 = vmatpush2.bf16.xpose.msra.mxu0 0
    %1240 = vmatprep.subr.bf16.mxu0 0
    %1241 = vmatpush2.bf16.xpose.msra.mxu0 0
    %1242 = vmatprep.subr.bf16.mxu0 0
    %1243 = vmatpush2.bf16.xpose.msra.mxu0 0
    %1244 = vmatprep.subr.bf16.mxu0 0
    %1245 = vmatpush2.bf16.xpose.msra.mxu0 0
    %1246 = vmatprep.subr.bf16.mxu0 0
    %1247 = vmatpush2.bf16.xpose.msra.mxu0 0
    %1248 = vmatprep.subr.bf16.mxu0 0
    %1249 = vmatpush2.bf16.xpose.msra.mxu0 0
    %1250 = vmatprep.subr.bf16.mxu0 0
    %1251 = vmatpush2.bf16.xpose.msra.mxu0 0
    %1252 = vmatprep.subr.bf16.mxu0 0
    %1253 = vmatpush2.bf16.xpose.msra.mxu0 0
    %1254 = vmatprep.mubr.bf16.mxu0 %v552
    %1255 = vmatmul.mubr.bf16.gmra.mxu0 %v551
    %v1256 = vpop.f32.mrf.mxu0
    %v1257 = vadd.f32 %v1217, %v1256
    %v1258 = vpop.f32.mrf.mxu0
    %v1259 = vpop.f32.mrf.mxu0
    %v1260 = vpop.f32.mrf.mxu0
    %1261 = vdwg.mxu0
    %v1262 = vld [vmem:[%s2] sm:$0x3f]
    %v1264 = vcombine.high %v1262, %v1262
    %v1266 = vunpack.c.l.s4 1983009808
    %v1267 = vunpack.c.0.s8 %v1266
    %v1268 = vlaneseq
    %v1269 = vshrl.u32 %v1268, 7
    %v1270 = vsub.s32 %v1267, %v1269
    %v1271 = vrot.slane %v1262, %v1270
    %v1273 = vunpack.c.l.s4 1983009808
    %v1274 = vunpack.c.0.s8 %v1273
    %v1275 = vlaneseq
    %v1276 = vshrl.u32 %v1275, 7
    %v1277 = vsub.s32 %v1274, %v1276
    %v1278 = vrot.slane %v1264, %v1277
    %v1279 = vcombine.high %v1271, %v1271
    %v1283 = vpack.c.bf16 %v1271, %v1271
    %v1284 = vpack.c.bf16 %v1279, %v1279
    %v1285 = vpack.c.bf16 %v1278, %v1278
    %v1286 = vld [vmem:[#allocation4] sm:$0xf]
    %v1287 = vld [vmem:[#allocation4 + $0x4] sm:$0xf]
    %v1288 = vld [vmem:[#allocation4 + $0x8] sm:$0xf]
    %v1289 = vld [vmem:[#allocation4 + $0xc] sm:$0xf]
    %v1290 = vld [vmem:[#allocation4 + $0x10] sm:$0xf]
    %v1291 = vld [vmem:[#allocation4 + $0x14] sm:$0xf]
    %v1292 = vld [vmem:[#allocation4 + $0x18] sm:$0xf]
    %v1293 = vld [vmem:[#allocation4 + $0x1c] sm:$0xf]
    %v1294 = vld [vmem:[#allocation4 + $0x20] sm:$0xf]
    %v1295 = vld [vmem:[#allocation4 + $0x24] sm:$0xf]
    %v1296 = vld [vmem:[#allocation4 + $0x28] sm:$0xf]
    %v1297 = vld [vmem:[#allocation4 + $0x2c] sm:$0xf]
    %v1298 = vld [vmem:[#allocation4 + $0x30] sm:$0xf]
    %v1299 = vld [vmem:[#allocation4 + $0x34] sm:$0xf]
    %v1300 = vld [vmem:[#allocation4 + $0x38] sm:$0xf]
    %v1301 = vld [vmem:[#allocation4 + $0x3c] sm:$0xf]
    %v1302 = vld [vmem:[#allocation4 + $0x40] sm:$0xf]
    %v1303 = vld [vmem:[#allocation4 + $0x44] sm:$0xf]
    %v1304 = vld [vmem:[#allocation4 + $0x48] sm:$0xf]
    %v1305 = vld [vmem:[#allocation4 + $0x4c] sm:$0xf]
    %v1306 = vld [vmem:[#allocation4 + $0x50] sm:$0xf]
    %v1307 = vld [vmem:[#allocation4 + $0x54] sm:$0xf]
    %v1308 = vld [vmem:[#allocation4 + $0x58] sm:$0xf]
    %v1309 = vld [vmem:[#allocation4 + $0x5c] sm:$0xf]
    %v1310 = vld [vmem:[#allocation4 + $0x60] sm:$0xf]
    %v1311 = vld [vmem:[#allocation4 + $0x64] sm:$0xf]
    %v1312 = vld [vmem:[#allocation4 + $0x68] sm:$0xf]
    %v1313 = vld [vmem:[#allocation4 + $0x6c] sm:$0xf]
    %v1314 = vld [vmem:[#allocation4 + $0x70] sm:$0xf]
    %v1315 = vld [vmem:[#allocation4 + $0x74] sm:$0xf]
    %v1316 = vld [vmem:[#allocation4 + $0x78] sm:$0xf]
    %v1317 = vld [vmem:[#allocation4 + $0x7c] sm:$0xf]
    %v1318 = vld [vmem:[#allocation4 + $0x80] sm:$0xf]
    %v1319 = vld [vmem:[#allocation4 + $0x84] sm:$0xf]
    %v1320 = vld [vmem:[#allocation4 + $0x88] sm:$0xf]
    %v1321 = vld [vmem:[#allocation4 + $0x8c] sm:$0xf]
    %v1322 = vld [vmem:[#allocation4 + $0x90] sm:$0xf]
    %v1323 = vld [vmem:[#allocation4 + $0x94] sm:$0xf]
    %v1324 = vld [vmem:[#allocation4 + $0x98] sm:$0xf]
    %v1325 = vld [vmem:[#allocation4 + $0x9c] sm:$0xf]
    %v1326 = vld [vmem:[#allocation4 + $0xa0] sm:$0x3]
    %v1327 = vld [vmem:[%s5 + $0x1] sm:$0x1]
    %v1328 = vlaneseq
    %v1329 = vshrl.u32 %v1328, 7
    %v1330 = vsub.s32 0, %v1329
    %v1331 = vrot.slane %v1327, %v1330
    %v1373 = vunpack.c.l.b16 %v1286
    %v1374 = vunpack.c.l.b16 %v1287
    %v1375 = vunpack.c.l.b16 %v1288
    %v1376 = vunpack.c.l.b16 %v1289
    %v1377 = vunpack.c.l.b16 %v1290
    %v1378 = vunpack.c.l.b16 %v1291
    %v1379 = vunpack.c.l.b16 %v1292
    %v1380 = vunpack.c.l.b16 %v1293
    %v1381 = vunpack.c.l.b16 %v1294
    %v1382 = vunpack.c.l.b16 %v1295
    %v1383 = vunpack.c.l.b16 %v1296
    %v1384 = vunpack.c.l.b16 %v1297
    %v1385 = vunpack.c.l.b16 %v1298
    %v1386 = vunpack.c.l.b16 %v1299
    %v1387 = vunpack.c.l.b16 %v1300
    %v1388 = vunpack.c.l.b16 %v1301
    %v1389 = vunpack.c.l.b16 %v1302
    %v1390 = vunpack.c.l.b16 %v1303
    %v1391 = vunpack.c.l.b16 %v1304
    %v1392 = vunpack.c.l.b16 %v1305
    %v1393 = vunpack.c.l.b16 %v1306
    %v1394 = vunpack.c.l.b16 %v1307
    %v1395 = vunpack.c.l.b16 %v1308
    %v1396 = vunpack.c.l.b16 %v1309
    %v1397 = vunpack.c.l.b16 %v1310
    %v1398 = vunpack.c.l.b16 %v1311
    %v1399 = vunpack.c.l.b16 %v1312
    %v1400 = vunpack.c.l.b16 %v1313
    %v1401 = vunpack.c.l.b16 %v1314
    %v1402 = vunpack.c.l.b16 %v1315
    %v1403 = vunpack.c.l.b16 %v1316
    %v1404 = vunpack.c.l.b16 %v1317
    %v1405 = vunpack.c.l.b16 %v1318
    %v1406 = vunpack.c.l.b16 %v1319
    %v1407 = vunpack.c.l.b16 %v1320
    %v1408 = vunpack.c.l.b16 %v1321
    %v1409 = vunpack.c.l.b16 %v1322
    %v1410 = vunpack.c.l.b16 %v1323
    %v1411 = vunpack.c.l.b16 %v1324
    %v1412 = vunpack.c.l.b16 %v1325
    %v1413 = vunpack.c.l.b16 %v1326
    %v1414 = vpack.c.b16 %v1374, %v1373
    %v1415 = vpack.c.b16 %v1376, %v1375
    %v1416 = vpack.c.b16 %v1378, %v1377
    %v1417 = vpack.c.b16 %v1380, %v1379
    %v1418 = vpack.c.b16 %v1382, %v1381
    %v1419 = vpack.c.b16 %v1384, %v1383
    %v1420 = vpack.c.b16 %v1386, %v1385
    %v1421 = vpack.c.b16 %v1388, %v1387
    %v1422 = vpack.c.b16 %v1390, %v1389
    %v1423 = vpack.c.b16 %v1392, %v1391
    %v1424 = vpack.c.b16 %v1394, %v1393
    %v1425 = vpack.c.b16 %v1396, %v1395
    %v1426 = vpack.c.b16 %v1398, %v1397
    %v1427 = vpack.c.b16 %v1400, %v1399
    %v1428 = vpack.c.b16 %v1402, %v1401
    %v1429 = vpack.c.b16 %v1404, %v1403
    %v1430 = vpack.c.b16 %v1406, %v1405
    %v1431 = vpack.c.b16 %v1408, %v1407
    %v1432 = vpack.c.b16 %v1410, %v1409
    %v1433 = vpack.c.b16 %v1412, %v1411
    %v1434 = vpack.c.b16 %v1413, %v1413
    %vm1455 = vcmask 556032
    %v1457 = vsel %vm1455, %v1285, 0
    %vm1459 = vcmask 1041408
    %v1461 = vsel %vm1459, %v1434, 0
    %1463 = vmatprep.subr.bf16.mxu0 0
    %1464 = vmatpush1.bf16.msra.mxu0 %v1421
    %1465 = vmatprep.subr.bf16.mxu0 0
    %1466 = vmatpush1.bf16.msra.mxu0 %v1420
    %1467 = vmatprep.subr.bf16.mxu0 0
    %1468 = vmatpush1.bf16.msra.mxu0 %v1419
    %1469 = vmatprep.subr.bf16.mxu0 0
    %1470 = vmatpush1.bf16.msra.mxu0 %v1418
    %1471 = vmatprep.subr.bf16.mxu0 0
    %1472 = vmatpush1.bf16.msra.mxu0 %v1417
    %1473 = vmatprep.subr.bf16.mxu0 0
    %1474 = vmatpush1.bf16.msra.mxu0 %v1416
    %1475 = vmatprep.subr.bf16.mxu0 0
    %1476 = vmatpush1.bf16.msra.mxu0 %v1415
    %1477 = vmatprep.subr.bf16.mxu0 0
    %1478 = vmatpush1.bf16.msra.mxu0 %v1414
    %1479 = vmatprep.subr.bf16.mxu0 0
    %1480 = vmatpush2.bf16.msra.mxu0 %v1429
    %1481 = vmatprep.subr.bf16.mxu0 0
    %1482 = vmatpush2.bf16.msra.mxu0 %v1428
    %1483 = vmatprep.subr.bf16.mxu0 0
    %1484 = vmatpush2.bf16.msra.mxu0 %v1427
    %1485 = vmatprep.subr.bf16.mxu0 0
    %1486 = vmatpush2.bf16.msra.mxu0 %v1426
    %1487 = vmatprep.subr.bf16.mxu0 0
    %1488 = vmatpush2.bf16.msra.mxu0 %v1425
    %1489 = vmatprep.subr.bf16.mxu0 0
    %1490 = vmatpush2.bf16.msra.mxu0 %v1424
    %1491 = vmatprep.subr.bf16.mxu0 0
    %1492 = vmatpush2.bf16.msra.mxu0 %v1423
    %1493 = vmatprep.subr.bf16.mxu0 0
    %1494 = vmatpush2.bf16.msra.mxu0 %v1422
    %1495 = vmatprep.mubr.bf16.mxu0 %v1284
    %1496 = vmatmul.mubr.bf16.gmra.mxu0 %v1283
    %v1497 = vpop.f32.mrf.mxu0
    %v1498 = vadd.f32 %v1331, %v1497
    %v1499 = vpop.f32.mrf.mxu0
    %v1500 = vpop.f32.mrf.mxu0
    %v1501 = vpop.f32.mrf.mxu0
    %1502 = vdwg.mxu0
    %1503 = vmatprep.subr.bf16.mxu0 0
    %1504 = vmatpush1.bf16.msra.mxu0 0
    %1505 = vmatprep.subr.bf16.mxu0 0
    %1506 = vmatpush1.bf16.msra.mxu0 0
    %1507 = vmatprep.subr.bf16.mxu0 0
    %1508 = vmatpush1.bf16.msra.mxu0 0
    %1509 = vmatprep.subr.bf16.mxu0 0
    %1510 = vmatpush1.bf16.msra.mxu0 %v1461
    %1511 = vmatprep.subr.bf16.mxu0 0
    %1512 = vmatpush1.bf16.msra.mxu0 %v1433
    %1513 = vmatprep.subr.bf16.mxu0 0
    %1514 = vmatpush1.bf16.msra.mxu0 %v1432
    %1515 = vmatprep.subr.bf16.mxu0 0
    %1516 = vmatpush1.bf16.msra.mxu0 %v1431
    %1517 = vmatprep.subr.bf16.mxu0 0
    %1518 = vmatpush1.bf16.msra.mxu0 %v1430
    %1519 = vmatprep.subr.bf16.mxu0 0
    %1520 = vmatpush2.bf16.msra.mxu0 0
    %1521 = vmatprep.subr.bf16.mxu0 0
    %1522 = vmatpush2.bf16.msra.mxu0 0
    %1523 = vmatprep.subr.bf16.mxu0 0
    %1524 = vmatpush2.bf16.msra.mxu0 0
    %1525 = vmatprep.subr.bf16.mxu0 0
    %1526 = vmatpush2.bf16.msra.mxu0 0
    %1527 = vmatprep.subr.bf16.mxu0 0
    %1528 = vmatpush2.bf16.msra.mxu0 0
    %1529 = vmatprep.subr.bf16.mxu0 0
    %1530 = vmatpush2.bf16.msra.mxu0 0
    %1531 = vmatprep.subr.bf16.mxu0 0
    %1532 = vmatpush2.bf16.msra.mxu0 0
    %1533 = vmatprep.subr.bf16.mxu0 0
    %1534 = vmatpush2.bf16.msra.mxu0 0
    %1535 = vmatprep.mubr.bf16.mxu0 0
    %1536 = vmatmul.mubr.bf16.gmra.mxu0 %v1457
    %v1537 = vpop.f32.mrf.mxu0
    %v1538 = vadd.f32 %v1498, %v1537
    %v1539 = vpop.f32.mrf.mxu0
    %v1540 = vpop.f32.mrf.mxu0
    %v1541 = vpop.f32.mrf.mxu0
    %1542 = vdwg.mxu0
    %v1543 = vmax.f32 %v1538, 0.0
    %v1544 = vld [vmem:[%s5 + $0x2] sm:$0x1]
    %v1545 = vld [vmem:[%s5 + $0x3] sm:$0x1]
    %vm1546 = vcmask 812032
    %v1547 = vsel %vm1546, %v1543, 0.0
    %v1548 = vrot.slane %v1547, 4
    %v1549 = vadd.f32 %v1547, %v1548
    %v1550 = vrot.slane %v1549, 2
    %v1551 = vadd.f32 %v1549, %v1550
    %v1552 = vrot.slane %v1551, 1
    %v1553 = vadd.f32 %v1551, %v1552
    %v1554 = vrcp.pop 2.0
    %v1555 = vmul.f32 %v1553, %v1554
    %v1556 = vsub.f32 %v1543, %v1555
    %v1557 = vmul.f32 %v1556, %v1556
    %v1558 = vsel %vm1546, %v1557, 0.0
    %v1559 = vrot.slane %v1558, 4
    %v1560 = vadd.f32 %v1558, %v1559
    %v1561 = vrot.slane %v1560, 2
    %v1562 = vadd.f32 %v1560, %v1561
    %v1563 = vrot.slane %v1562, 1
    %v1564 = vadd.f32 %v1562, %v1563
    %v1565 = vmul.f32 %v1564, %v1554
    %v1566 = vadd.f32 %v1565, 1e-05
    %v1567 = vrsqrt.pop %v1566
    %v1568 = vmul.f32 %v1556, %v1567
    %v1569 = vlaneseq
    %v1570 = vshrl.u32 %v1569, 7
    %v1571 = vsub.s32 0, %v1570
    %v1572 = vrot.slane %v1544, %v1571
    %v1573 = vmul.f32 %v1568, %v1572
    %v1574 = vlaneseq
    %v1575 = vshrl.u32 %v1574, 7
    %v1576 = vsub.s32 0, %v1575
    %v1577 = vrot.slane %v1545, %v1576
    %v1578 = vadd.f32 %v1573, %v1577
    %v1579 = vpack.c.bf16 %v1578, %v1578
    %v1580 = vld [vmem:[#allocation4 + $0xa8] sm:$0xf]
    %v1581 = vld [vmem:[#allocation4 + $0xac] sm:$0xf]
    %v1582 = vld [vmem:[#allocation4 + $0xb0] sm:$0xf]
    %v1583 = vld [vmem:[#allocation4 + $0xb4] sm:$0xf]
    %v1584 = vld [vmem:[#allocation4 + $0xb8] sm:$0xf]
    %v1585 = vld [vmem:[#allocation4 + $0xbc] sm:$0xf]
    %v1586 = vld [vmem:[#allocation4 + $0xc0] sm:$0xf]
    %v1587 = vld [vmem:[#allocation4 + $0xc4] sm:$0xf]
    %v1588 = vld [vmem:[#allocation4 + $0xc8] sm:$0xf]
    %v1589 = vld [vmem:[#allocation4 + $0xcc] sm:$0xf]
    %v1590 = vld [vmem:[#allocation4 + $0xd0] sm:$0xf]
    %v1591 = vld [vmem:[#allocation4 + $0xd4] sm:$0xf]
    %v1592 = vld [vmem:[#allocation4 + $0xd8] sm:$0x3]
    %v1593 = vld [vmem:[%s5 + $0x4] sm:$0x1]
    %v1594 = vlaneseq
    %v1595 = vshrl.u32 %v1594, 7
    %v1596 = vsub.s32 0, %v1595
    %v1597 = vrot.slane %v1593, %v1596
    %v1611 = vunpack.c.l.b16 %v1580
    %v1612 = vunpack.c.l.b16 %v1581
    %v1613 = vunpack.c.l.b16 %v1582
    %v1614 = vunpack.c.l.b16 %v1583
    %v1615 = vunpack.c.l.b16 %v1584
    %v1616 = vunpack.c.l.b16 %v1585
    %v1617 = vunpack.c.l.b16 %v1586
    %v1618 = vunpack.c.l.b16 %v1587
    %v1619 = vunpack.c.l.b16 %v1588
    %v1620 = vunpack.c.l.b16 %v1589
    %v1621 = vunpack.c.l.b16 %v1590
    %v1622 = vunpack.c.l.b16 %v1591
    %v1623 = vunpack.c.l.b16 %v1592
    %v1624 = vpack.c.b16 %v1612, %v1611
    %v1625 = vpack.c.b16 %v1614, %v1613
    %v1626 = vpack.c.b16 %v1616, %v1615
    %v1627 = vpack.c.b16 %v1618, %v1617
    %v1628 = vpack.c.b16 %v1620, %v1619
    %v1629 = vpack.c.b16 %v1622, %v1621
    %v1630 = vpack.c.b16 %v1623, %v1623
    %vm1637 = vcmask 818176
    %v1639 = vsel %vm1637, %v1579, 0
    %v1642 = vsel %vm1459, %v1630, 0
    %1644 = vmatprep.subr.bf16.mxu0 0
    %1645 = vmatpush1.bf16.msra.mxu0 0
    %1646 = vmatprep.subr.bf16.mxu0 0
    %1647 = vmatpush1.bf16.msra.mxu0 %v1642
    %1648 = vmatprep.subr.bf16.mxu0 0
    %1649 = vmatpush1.bf16.msra.mxu0 %v1629
    %1650 = vmatprep.subr.bf16.mxu0 0
    %1651 = vmatpush1.bf16.msra.mxu0 %v1628
    %1652 = vmatprep.subr.bf16.mxu0 0
    %1653 = vmatpush1.bf16.msra.mxu0 %v1627
    %1654 = vmatprep.subr.bf16.mxu0 0
    %1655 = vmatpush1.bf16.msra.mxu0 %v1626
    %1656 = vmatprep.subr.bf16.mxu0 0
    %1657 = vmatpush1.bf16.msra.mxu0 %v1625
    %1658 = vmatprep.subr.bf16.mxu0 0
    %1659 = vmatpush1.bf16.msra.mxu0 %v1624
    %1660 = vmatprep.subr.bf16.mxu0 0
    %1661 = vmatpush2.bf16.msra.mxu0 0
    %1662 = vmatprep.subr.bf16.mxu0 0
    %1663 = vmatpush2.bf16.msra.mxu0 0
    %1664 = vmatprep.subr.bf16.mxu0 0
    %1665 = vmatpush2.bf16.msra.mxu0 0
    %1666 = vmatprep.subr.bf16.mxu0 0
    %1667 = vmatpush2.bf16.msra.mxu0 0
    %1668 = vmatprep.subr.bf16.mxu0 0
    %1669 = vmatpush2.bf16.msra.mxu0 0
    %1670 = vmatprep.subr.bf16.mxu0 0
    %1671 = vmatpush2.bf16.msra.mxu0 0
    %1672 = vmatprep.subr.bf16.mxu0 0
    %1673 = vmatpush2.bf16.msra.mxu0 0
    %1674 = vmatprep.subr.bf16.mxu0 0
    %1675 = vmatpush2.bf16.msra.mxu0 0
    %1676 = vmatprep.mubr.bf16.mxu0 0
    %1677 = vmatmul.mubr.bf16.gmra.mxu0 %v1639
    %v1678 = vpop.f32.mrf.mxu0
    %v1679 = vadd.f32 %v1597, %v1678
    %v1680 = vpop.f32.mrf.mxu0
    %v1681 = vpop.f32.mrf.mxu0
    %v1682 = vpop.f32.mrf.mxu0
    %1683 = vdwg.mxu0
    %v1684 = vmax.f32 %v1679, 0.0
    %v1685 = vld [vmem:[%s5 + $0x5] sm:$0x1]
    %v1686 = vld [vmem:[%s5 + $0x6] sm:$0x1]
    %vm1687 = vcmask 517120
    %v1688 = vsel %vm1687, %v1684, 0.0
    %v1689 = vrot.slane %v1688, 4
    %v1690 = vadd.f32 %v1688, %v1689
    %v1691 = vrot.slane %v1690, 2
    %v1692 = vadd.f32 %v1690, %v1691
    %v1693 = vrot.slane %v1692, 1
    %v1694 = vadd.f32 %v1692, %v1693
    %v1695 = vmul.f32 %v1694, %v1554
    %v1696 = vsub.f32 %v1684, %v1695
    %v1697 = vmul.f32 %v1696, %v1696
    %v1698 = vsel %vm1687, %v1697, 0.0
    %v1699 = vrot.slane %v1698, 4
    %v1700 = vadd.f32 %v1698, %v1699
    %v1701 = vrot.slane %v1700, 2
    %v1702 = vadd.f32 %v1700, %v1701
    %v1703 = vrot.slane %v1702, 1
    %v1704 = vadd.f32 %v1702, %v1703
    %v1705 = vmul.f32 %v1704, %v1554
    %v1706 = vadd.f32 %v1705, 1e-05
    %v1707 = vrsqrt.pop %v1706
    %v1708 = vmul.f32 %v1696, %v1707
    %v1709 = vlaneseq
    %v1710 = vshrl.u32 %v1709, 7
    %v1711 = vsub.s32 0, %v1710
    %v1712 = vrot.slane %v1685, %v1711
    %v1713 = vmul.f32 %v1708, %v1712
    %v1714 = vlaneseq
    %v1715 = vshrl.u32 %v1714, 7
    %v1716 = vsub.s32 0, %v1715
    %v1717 = vrot.slane %v1686, %v1716
    %v1718 = vadd.f32 %v1713, %v1717
    %v1719 = vld [vmem:[%s1] sm:$0x3]
    %v1720 = vpack.c.bf16 %v1719, %v1719
    %v1721 = vld [vmem:[#allocation4 + $0xe0] sm:$0xf]
    %v1722 = vld [vmem:[#allocation4 + $0xe4] sm:$0xf]
    %v1723 = vpack.c.bf16 %v1257, %v1257
    %v1724 = vld [vmem:[#allocation4 + $0xe8] sm:$0xf]
    %v1725 = vld [vmem:[#allocation4 + $0xec] sm:$0xf]
    %v1726 = vld [vmem:[#allocation4 + $0xf0] sm:$0xf]
    %v1727 = vld [vmem:[#allocation4 + $0xf4] sm:$0xf]
    %v1728 = vld [vmem:[#allocation4 + $0xf8] sm:$0xf]
    %v1729 = vld [vmem:[#allocation4 + $0xfc] sm:$0xf]
    %v1730 = vld [vmem:[#allocation4 + $0x100] sm:$0xf]
    %v1731 = vld [vmem:[#allocation4 + $0x104] sm:$0xf]
    %v1740 = vunpack.c.l.b16 %v1724
    %v1741 = vunpack.c.l.b16 %v1725
    %v1742 = vunpack.c.l.b16 %v1726
    %v1743 = vunpack.c.l.b16 %v1727
    %v1744 = vunpack.c.l.b16 %v1728
    %v1745 = vunpack.c.l.b16 %v1729
    %v1746 = vunpack.c.l.b16 %v1730
    %v1747 = vunpack.c.l.b16 %v1731
    %v1748 = vpack.c.b16 %v1741, %v1740
    %v1749 = vpack.c.b16 %v1743, %v1742
    %v1750 = vpack.c.b16 %v1745, %v1744
    %v1751 = vpack.c.b16 %v1747, %v1746
    %vm1756 = vcmask 523264
    %v1758 = vsel %vm1756, %v1723, 0
    %1760 = vmatprep.subr.bf16.mxu0 0
    %1761 = vmatpush1.bf16.msra.mxu0 0
    %1762 = vmatprep.subr.bf16.mxu0 0
    %1763 = vmatpush1.bf16.msra.mxu0 0
    %1764 = vmatprep.subr.bf16.mxu0 0
    %1765 = vmatpush1.bf16.msra.mxu0 0
    %1766 = vmatprep.subr.bf16.mxu0 0
    %1767 = vmatpush1.bf16.msra.mxu0 0
    %1768 = vmatprep.subr.bf16.mxu0 0
    %1769 = vmatpush1.bf16.msra.mxu0 %v1751
    %1770 = vmatprep.subr.bf16.mxu0 0
    %1771 = vmatpush1.bf16.msra.mxu0 %v1750
    %1772 = vmatprep.subr.bf16.mxu0 0
    %1773 = vmatpush1.bf16.msra.mxu0 %v1749
    %1774 = vmatprep.subr.bf16.mxu0 0
    %1775 = vmatpush1.bf16.msra.mxu0 %v1748
    %1776 = vmatprep.subr.bf16.mxu0 0
    %1777 = vmatpush2.bf16.msra.mxu0 0
    %1778 = vmatprep.subr.bf16.mxu0 0
    %1779 = vmatpush2.bf16.msra.mxu0 0
    %1780 = vmatprep.subr.bf16.mxu0 0
    %1781 = vmatpush2.bf16.msra.mxu0 0
    %1782 = vmatprep.subr.bf16.mxu0 0
    %1783 = vmatpush2.bf16.msra.mxu0 0
    %1784 = vmatprep.subr.bf16.mxu0 0
    %1785 = vmatpush2.bf16.msra.mxu0 0
    %1786 = vmatprep.subr.bf16.mxu0 0
    %1787 = vmatpush2.bf16.msra.mxu0 0
    %1788 = vmatprep.subr.bf16.mxu0 0
    %1789 = vmatpush2.bf16.msra.mxu0 0
    %1790 = vmatprep.subr.bf16.mxu0 0
    %1791 = vmatpush2.bf16.msra.mxu0 0
    %1792 = vmatprep.mubr.bf16.mxu0 0
    %1793 = vmatmul.mubr.bf16.gmra.mxu0 %v1758
    %v1794 = vpop.f32.mrf.mxu0
    %v1795 = vadd.f32 0.0, %v1794
    %v1796 = vpop.f32.mrf.mxu0
    %v1797 = vpop.f32.mrf.mxu0
    %v1798 = vpop.f32.mrf.mxu0
    %1799 = vdwg.mxu0
    %v1802 = vunpack.c.l.b16 %v1721
    %v1803 = vunpack.c.l.b16 %v1722
    %v1804 = vpack.c.b16 %v1803, %v1802
    %vm1806 = vcmask 130048
    %v1808 = vsel %vm1806, %v1720, 0
    %1810 = vmatprep.subr.bf16.mxu0 0
    %1811 = vmatpush1.bf16.msra.mxu0 0
    %1812 = vmatprep.subr.bf16.mxu0 0
    %1813 = vmatpush1.bf16.msra.mxu0 0
    %1814 = vmatprep.subr.bf16.mxu0 0
    %1815 = vmatpush1.bf16.msra.mxu0 0
    %1816 = vmatprep.subr.bf16.mxu0 0
    %1817 = vmatpush1.bf16.msra.mxu0 0
    %1818 = vmatprep.subr.bf16.mxu0 0
    %1819 = vmatpush1.bf16.msra.mxu0 0
    %1820 = vmatprep.subr.bf16.mxu0 0
    %1821 = vmatpush1.bf16.msra.mxu0 0
    %1822 = vmatprep.subr.bf16.mxu0 0
    %1823 = vmatpush1.bf16.msra.mxu0 0
    %1824 = vmatprep.subr.bf16.mxu0 0
    %1825 = vmatpush1.bf16.msra.mxu0 %v1804
    %1826 = vmatprep.subr.bf16.mxu0 0
    %1827 = vmatpush2.bf16.msra.mxu0 0
    %1828 = vmatprep.subr.bf16.mxu0 0
    %1829 = vmatpush2.bf16.msra.mxu0 0
    %1830 = vmatprep.subr.bf16.mxu0 0
    %1831 = vmatpush2.bf16.msra.mxu0 0
    %1832 = vmatprep.subr.bf16.mxu0 0
    %1833 = vmatpush2.bf16.msra.mxu0 0
    %1834 = vmatprep.subr.bf16.mxu0 0
    %1835 = vmatpush2.bf16.msra.mxu0 0
    %1836 = vmatprep.subr.bf16.mxu0 0
    %1837 = vmatpush2.bf16.msra.mxu0 0
    %1838 = vmatprep.subr.bf16.mxu0 0
    %1839 = vmatpush2.bf16.msra.mxu0 0
    %1840 = vmatprep.subr.bf16.mxu0 0
    %1841 = vmatpush2.bf16.msra.mxu0 0
    %1842 = vmatprep.mubr.bf16.mxu0 0
    %1843 = vmatmul.mubr.bf16.gmra.mxu0 %v1808
    %v1844 = vpop.f32.mrf.mxu0
    %v1845 = vadd.f32 %v1795, %v1844
    %v1846 = vpop.f32.mrf.mxu0
    %v1847 = vpop.f32.mrf.mxu0
    %v1848 = vpop.f32.mrf.mxu0
    %1849 = vdwg.mxu0
    %v1850 = vpack.c.bf16 %v1718, %v1718
    %v1851 = vld [vmem:[#allocation4 + $0x108] sm:$0xf]
    %v1852 = vld [vmem:[#allocation4 + $0x10c] sm:$0xf]
    %v1853 = vld [vmem:[#allocation4 + $0x110] sm:$0xf]
    %v1854 = vld [vmem:[#allocation4 + $0x114] sm:$0xf]
    %v1855 = vld [vmem:[#allocation4 + $0x118] sm:$0xf]
    %v1856 = vld [vmem:[#allocation4 + $0x11c] sm:$0xf]
    %v1857 = vld [vmem:[#allocation4 + $0x120] sm:$0xf]
    %v1858 = vld [vmem:[#allocation4 + $0x124] sm:$0xf]
    %v1867 = vunpack.c.l.b16 %v1851
    %v1868 = vunpack.c.l.b16 %v1852
    %v1869 = vunpack.c.l.b16 %v1853
    %v1870 = vunpack.c.l.b16 %v1854
    %v1871 = vunpack.c.l.b16 %v1855
    %v1872 = vunpack.c.l.b16 %v1856
    %v1873 = vunpack.c.l.b16 %v1857
    %v1874 = vunpack.c.l.b16 %v1858
    %v1875 = vpack.c.b16 %v1868, %v1867
    %v1876 = vpack.c.b16 %v1870, %v1869
    %v1877 = vpack.c.b16 %v1872, %v1871
    %v1878 = vpack.c.b16 %v1874, %v1873
    %v1884 = vsel %vm1756, %v1850, 0
    %1886 = vmatprep.subr.bf16.mxu0 0
    %1887 = vmatpush1.bf16.msra.mxu0 0
    %1888 = vmatprep.subr.bf16.mxu0 0
    %1889 = vmatpush1.bf16.msra.mxu0 0
    %1890 = vmatprep.subr.bf16.mxu0 0
    %1891 = vmatpush1.bf16.msra.mxu0 0
    %1892 = vmatprep.subr.bf16.mxu0 0
    %1893 = vmatpush1.bf16.msra.mxu0 0
    %1894 = vmatprep.subr.bf16.mxu0 0
    %1895 = vmatpush1.bf16.msra.mxu0 %v1878
    %1896 = vmatprep.subr.bf16.mxu0 0
    %1897 = vmatpush1.bf16.msra.mxu0 %v1877
    %1898 = vmatprep.subr.bf16.mxu0 0
    %1899 = vmatpush1.bf16.msra.mxu0 %v1876
    %1900 = vmatprep.subr.bf16.mxu0 0
    %1901 = vmatpush1.bf16.msra.mxu0 %v1875
    %1902 = vmatprep.subr.bf16.mxu0 0
    %1903 = vmatpush2.bf16.msra.mxu0 0
    %1904 = vmatprep.subr.bf16.mxu0 0
    %1905 = vmatpush2.bf16.msra.mxu0 0
    %1906 = vmatprep.subr.bf16.mxu0 0
    %1907 = vmatpush2.bf16.msra.mxu0 0
    %1908 = vmatprep.subr.bf16.mxu0 0
    %1909 = vmatpush2.bf16.msra.mxu0 0
    %1910 = vmatprep.subr.bf16.mxu0 0
    %1911 = vmatpush2.bf16.msra.mxu0 0
    %1912 = vmatprep.subr.bf16.mxu0 0
    %1913 = vmatpush2.bf16.msra.mxu0 0
    %1914 = vmatprep.subr.bf16.mxu0 0
    %1915 = vmatpush2.bf16.msra.mxu0 0
    %1916 = vmatprep.subr.bf16.mxu0 0
    %1917 = vmatpush2.bf16.msra.mxu0 0
    %1918 = vmatprep.mubr.bf16.mxu0 0
    %1919 = vmatmul.mubr.bf16.gmra.mxu0 %v1884
    %v1920 = vpop.f32.mrf.mxu0
    %v1921 = vadd.f32 0.0, %v1920
    %v1922 = vpop.f32.mrf.mxu0
    %v1923 = vpop.f32.mrf.mxu0
    %v1924 = vpop.f32.mrf.mxu0
    %1925 = vdwg.mxu0
    %v1926 = vadd.f32 %v1845, %v1921
    %v1927 = vld [vmem:[%s5 + $0x7] sm:$0x1]
    %v1928 = vlaneseq
    %v1929 = vshrl.u32 %v1928, 7
    %v1930 = vsub.s32 0, %v1929
    %v1931 = vrot.slane %v1927, %v1930
    %v1932 = vadd.f32 %v1926, %v1931
    %v1933 = vmax.f32 %v1932, 0.0
    %v1934 = vpack.c.bf16 %v1933, %v1933
    %v1935 = vld [vmem:[#allocation4 + $0x128] sm:$0xf]
    %v1936 = vld [vmem:[#allocation4 + $0x12c] sm:$0xf]
    %v1937 = vld [vmem:[#allocation4 + $0x130] sm:$0xf]
    %v1938 = vld [vmem:[#allocation4 + $0x134] sm:$0xf]
    %v1939 = vld [vmem:[#allocation4 + $0x138] sm:$0xf]
    %v1940 = vld [vmem:[#allocation4 + $0x13c] sm:$0xf]
    %v1941 = vld [vmem:[#allocation4 + $0x140] sm:$0xf]
    %v1942 = vld [vmem:[#allocation4 + $0x144] sm:$0xf]
    %v1943 = vld [vmem:[#allocation4 + $0x148] sm:$0xf]
    %v1944 = vld [vmem:[#allocation4 + $0x14c] sm:$0xf]
    %v1945 = vld [vmem:[#allocation4 + $0x150] sm:$0xf]
    %v1946 = vld [vmem:[#allocation4 + $0x154] sm:$0xf]
    %v1947 = vld [vmem:[#allocation4 + $0x158] sm:$0x3]
    %v1948 = vld [vmem:[%s5 + $0x8] sm:$0x1]
    %v1949 = vlaneseq
    %v1950 = vshrl.u32 %v1949, 7
    %v1951 = vsub.s32 0, %v1950
    %v1952 = vrot.slane %v1948, %v1951
    %v1966 = vunpack.c.l.b16 %v1935
    %v1967 = vunpack.c.l.b16 %v1936
    %v1968 = vunpack.c.l.b16 %v1937
    %v1969 = vunpack.c.l.b16 %v1938
    %v1970 = vunpack.c.l.b16 %v1939
    %v1971 = vunpack.c.l.b16 %v1940
    %v1972 = vunpack.c.l.b16 %v1941
    %v1973 = vunpack.c.l.b16 %v1942
    %v1974 = vunpack.c.l.b16 %v1943
    %v1975 = vunpack.c.l.b16 %v1944
    %v1976 = vunpack.c.l.b16 %v1945
    %v1977 = vunpack.c.l.b16 %v1946
    %v1978 = vunpack.c.l.b16 %v1947
    %v1979 = vpack.c.b16 %v1967, %v1966
    %v1980 = vpack.c.b16 %v1969, %v1968
    %v1981 = vpack.c.b16 %v1971, %v1970
    %v1982 = vpack.c.b16 %v1973, %v1972
    %v1983 = vpack.c.b16 %v1975, %v1974
    %v1984 = vpack.c.b16 %v1977, %v1976
    %v1985 = vpack.c.b16 %v1978, %v1978
    %v1993 = vsel %vm1637, %v1934, 0
    %v1996 = vsel %vm1459, %v1985, 0
    %1998 = vmatprep.subr.bf16.mxu0 0
    %1999 = vmatpush1.bf16.msra.mxu0 0
    %2000 = vmatprep.subr.bf16.mxu0 0
    %2001 = vmatpush1.bf16.msra.mxu0 %v1996
    %2002 = vmatprep.subr.bf16.mxu0 0
    %2003 = vmatpush1.bf16.msra.mxu0 %v1984
    %2004 = vmatprep.subr.bf16.mxu0 0
    %2005 = vmatpush1.bf16.msra.mxu0 %v1983
    %2006 = vmatprep.subr.bf16.mxu0 0
    %2007 = vmatpush1.bf16.msra.mxu0 %v1982
    %2008 = vmatprep.subr.bf16.mxu0 0
    %2009 = vmatpush1.bf16.msra.mxu0 %v1981
    %2010 = vmatprep.subr.bf16.mxu0 0
    %2011 = vmatpush1.bf16.msra.mxu0 %v1980
    %2012 = vmatprep.subr.bf16.mxu0 0
    %2013 = vmatpush1.bf16.msra.mxu0 %v1979
    %2014 = vmatprep.subr.bf16.mxu0 0
    %2015 = vmatpush2.bf16.msra.mxu0 0
    %2016 = vmatprep.subr.bf16.mxu0 0
    %2017 = vmatpush2.bf16.msra.mxu0 0
    %2018 = vmatprep.subr.bf16.mxu0 0
    %2019 = vmatpush2.bf16.msra.mxu0 0
    %2020 = vmatprep.subr.bf16.mxu0 0
    %2021 = vmatpush2.bf16.msra.mxu0 0
    %2022 = vmatprep.subr.bf16.mxu0 0
    %2023 = vmatpush2.bf16.msra.mxu0 0
    %2024 = vmatprep.subr.bf16.mxu0 0
    %2025 = vmatpush2.bf16.msra.mxu0 0
    %2026 = vmatprep.subr.bf16.mxu0 0
    %2027 = vmatpush2.bf16.msra.mxu0 0
    %2028 = vmatprep.subr.bf16.mxu0 0
    %2029 = vmatpush2.bf16.msra.mxu0 0
    %2030 = vmatprep.mubr.bf16.mxu0 0
    %2031 = vmatmul.mubr.bf16.gmra.mxu0 %v1993
    %v2032 = vpop.f32.mrf.mxu0
    %v2033 = vadd.f32 %v1952, %v2032
    %v2034 = vpop.f32.mrf.mxu0
    %v2035 = vpop.f32.mrf.mxu0
    %v2036 = vpop.f32.mrf.mxu0
    %2037 = vdwg.mxu0
    %vm2038 = vcmask 156672
    %2039 = vst.msk [vmem:[%s6] sm:$0x3] %vm2038, %v2033
    // Predicated region
    $region34: #{mind_hog_forward.1} parent=1 // pred_check
      _
    $region35: #{mind_hog_forward.1} parent=1 // pred_check_branch
      %2041 = sbr.rel (0) target = $region37
    $region36: #{mind_hog_forward.1} parent=1 // pred_region
      _
    $region37: #{mind_hog_forward.1} parent=1 // pred_fallthru
      _
    // Predicated region
    $region38: #{mind_hog_forward.1} parent=1 // pred_check
      _
    $region39: #{mind_hog_forward.1} parent=1 // pred_check_branch
      %2043 = sbr.rel (0) target = $region41
    $region40: #{mind_hog_forward.1} parent=1 // pred_region
      _
    $region41: #{mind_hog_forward.1} parent=1 // pred_fallthru
      _
    %2044 = vsyncpa [#allocation3], 1
    %2045 = vsyncpa [#allocation5], 1

</llo_original>
